<compile_context>
chip_gen: v7x
topology: tpu7x:2x2x1
jax: 0.10.0
libtpu: 0.0.40
codegen_flags: <defaults>
</compile_context>

<pallas_src>
import functools

import jax
import jax.numpy as jnp
from jax.experimental import pallas as pl
from jax.experimental.pallas import tpu as pltpu


# ----------------------------------------------------------------------------
# Pallas kernel:  O = act( W @ A + b )
#   W : (R, K)  bf16   folded (BN-scaled) weights, grid-invariant
#   A : (K, TM) bf16   activation / patch tile (M on lanes -> lane-dense)
#   b : (R, 1)  f32    folded BN bias (plus skip bias for the deconvs)
#   act = Mish(y) = y * tanh(softplus(y)) = y * (1 - 2 / ((1 + e^y)^2 + 1))
# ----------------------------------------------------------------------------
def _gemm_bias_act_kernel(w_ref, a_ref, b_ref, o_ref, *, apply_mish):
    y = jnp.dot(w_ref[...], a_ref[...], preferred_element_type=jnp.float32)
    y = y + b_ref[...]                                   # (R,1) bcast over lanes
    if apply_mish:
        # Mish with one transcendental: tanh(softplus(y)) = 1 - 2/((1+e^y)^2+1)
        t = jnp.exp(jnp.minimum(y, 20.0))                # clamp: y>20 -> factor ~1
        u = t + 1.0
        y = y * (1.0 - 2.0 * pl.reciprocal(u * u + 1.0, approx=True))
    o_ref[...] = y.astype(o_ref.dtype)


def _pick_tm(m):
    """Lane-tile for M. Keep >=2 grid steps when M >= 256 (v7x: 2 TCs/chip),
    cap at 512 lanes so double-buffered patch tiles fit v7x's 64 MiB VMEM."""
    if m >= 1024:
        return 512
    if m >= 512:
        return 256
    if m >= 256:
        return 128
    return ((m + 127) // 128) * 128        # single tile, padded to 128 lanes


def gemm_bias_act(w, a, bias, apply_mish=True, out_dtype=jnp.bfloat16):
    """w: (R, K) folded weights, a: (K, M) patches, bias: (R, 1) f32."""
    r, k = w.shape
    m = a.shape[1]
    tm = _pick_tm(m)
    mp = pl.cdiv(m, tm) * tm
    if mp != m:
        a = jnp.pad(a, ((0, 0), (0, mp - m)))

    kernel = functools.partial(_gemm_bias_act_kernel, apply_mish=apply_mish)
    out = pl.pallas_call(
        kernel,
        out_shape=jax.ShapeDtypeStruct((r, mp), out_dtype),
        grid=(mp // tm,),
        in_specs=[
            pl.BlockSpec((r, k), lambda i: (0, 0)),       # weights (grid-invariant)
            pl.BlockSpec((k, tm), lambda i: (0, i)),      # patch tile (lane-dense)
            pl.BlockSpec((r, 1), lambda i: (0, 0)),       # bias column
        ],
        out_specs=pl.BlockSpec((r, tm), lambda i: (0, i)),
        compiler_params=pltpu.CompilerParams(
            dimension_semantics=("parallel",),
            vmem_limit_bytes=32 * 1024 * 1024,
        ),
    )(w.astype(jnp.bfloat16), a.astype(jnp.bfloat16), bias.astype(jnp.float32))
    return out[:, :m] if mp != m else out


# ----------------------------------------------------------------------------
# Plain-JAX glue: channels-first im2col, weight layout, BN folding.
# ----------------------------------------------------------------------------
def im2col_cf(x, ksz, stride, pad):
    """x: (C, N, D, H, W) -> (ksz^3*C, M) patches, output spatial shape."""
    c, n, d, h, w = x.shape
    xp = jnp.pad(x, ((0, 0), (0, 0), (pad, pad), (pad, pad), (pad, pad)))
    do = (d + 2 * pad - ksz) // stride + 1
    ho = (h + 2 * pad - ksz) // stride + 1
    wo = (w + 2 * pad - ksz) // stride + 1
    cols = []
    for kd in range(ksz):
        for kh in range(ksz):
            for kw in range(ksz):
                cols.append(xp[:, :, kd:kd + do * stride:stride,
                               kh:kh + ho * stride:stride,
                               kw:kw + wo * stride:stride])
    patches = jnp.concatenate(cols, axis=0)              # (k^3*C, N, Do, Ho, Wo)
    return patches.reshape(ksz ** 3 * c, n * do * ho * wo), (n, do, ho, wo)


def conv_w_to_gemm_t(w):
    """PyTorch Conv3d weight (Cout, Cin, kd, kh, kw) -> (Cout, kd*kh*kw*Cin),
    columns ordered tap-major / channel-minor to match im2col_cf rows."""
    return jnp.transpose(w, (0, 2, 3, 4, 1)).reshape(w.shape[0], -1)


def fold_bn(gamma, beta, mean, var, eps=1e-5):
    scale = gamma / jnp.sqrt(var + eps)
    return scale, beta - mean * scale


def conv_bn_mish(x, w_folded, bias, ksz, stride, pad,
                 apply_mish=True, out_dtype=jnp.bfloat16):
    patches, shp = im2col_cf(x, ksz, stride, pad)
    y = gemm_bias_act(w_folded, patches, bias, apply_mish, out_dtype)
    n, do, ho, wo = shp
    return y.reshape(w_folded.shape[0], n, do, ho, wo)


# ----------------------------------------------------------------------------
# ConvTranspose3d(k=3, stride=2, pad=1, out_pad=1): sub-pixel phase fusion.
# Per axis, output phase p uses input offset `off` with kernel index k:
#   p=0 (even):  off=0 -> k=1                (out[2j]   = x[j]*W[1])
#   p=1 (odd) :  off=0 -> k=2, off=1 -> k=0  (out[2j+1] = x[j]*W[2] + x[j+1]*W[0])
# ----------------------------------------------------------------------------
def _tap_kernel_idx(p_axis, off_axis):
    if p_axis == 0:
        return 1 if off_axis == 0 else None
    return 2 if off_axis == 0 else 0


def build_deconv_phase_params(w_deconv, scale_d, bias_d, w_redir, scale_s, bias_s):
    """Build the block-structured weight (8*Cout, 8*Cin + 8*Cs) and bias
    (8*Cout, 1) that fuse all 8 deconv phases + the 1x1 redir conv + both BNs
    into a single GEMM.  Done once at parameter-construction time."""
    cin, cout = w_deconv.shape[:2]              # ConvTranspose3d: (Cin, Cout, 3,3,3)
    cs = w_redir.shape[1]                       # redir Conv3d:    (Cout, Cs, 1,1,1)
    wsk = w_redir[:, :, 0, 0, 0] * scale_s[:, None]          # (Cout, Cs), BN folded
    zero_main = jnp.zeros((cout, cin), jnp.float32)
    zero_skip = jnp.zeros((cout, cs), jnp.float32)

    rows = []
    for pd in (0, 1):
        for ph in (0, 1):
            for pw in (0, 1):
                pidx = pd * 4 + ph * 2 + pw
                cols = []
                for od in (0, 1):                # main deconv taps (8 offset blocks)
                    for oh in (0, 1):
                        for ow in (0, 1):
                            kd = _tap_kernel_idx(pd, od)
                            kh = _tap_kernel_idx(ph, oh)
                            kw = _tap_kernel_idx(pw, ow)
                            if kd is None or kh is None or kw is None:
                                cols.append(zero_main)
                            else:
                                cols.append(w_deconv[:, :, kd, kh, kw].T
                                            * scale_d[:, None])
                for q in range(8):               # block-diagonal redir skip
                    cols.append(wsk if q == pidx else zero_skip)
                rows.append(jnp.concatenate(cols, axis=1))
    w_big = jnp.concatenate(rows, axis=0)                     # (8*Cout, 8*Cin+8*Cs)
    bias_big = jnp.tile((bias_d + bias_s)[:, None], (8, 1))   # (8*Cout, 1)
    return w_big, bias_big


def deconv_phase_fused(x, skip_x, w_big, bias_big, out_dtype=jnp.bfloat16):
    """FMish( ConvTranspose3d+BN (x) + redir(1x1 conv)+BN (skip_x) ), one GEMM.
    x: (Cin, N, D, H, W); skip_x: (Cs, N, 2D, 2H, 2W)."""
    cin, n, d, h, w = x.shape
    cs = skip_x.shape[0]
    cout = w_big.shape[0] // 8
    m = n * d * h * w

    xpad = jnp.pad(x, ((0, 0), (0, 0), (0, 1), (0, 1), (0, 1)))
    blocks = []
    for od in (0, 1):                            # 8 shifted input views
        for oh in (0, 1):
            for ow in (0, 1):
                blocks.append(xpad[:, :, od:od + d, oh:oh + h, ow:ow + w]
                              .reshape(cin, m))
    for pd in (0, 1):                            # 8 phase-strided skip views
        for ph in (0, 1):
            for pw in (0, 1):
                blocks.append(skip_x[:, :, pd::2, ph::2, pw::2].reshape(cs, m))
    a = jnp.concatenate(blocks, axis=0)          # (8*Cin + 8*Cs, M)

    y = gemm_bias_act(w_big, a, bias_big, apply_mish=True, out_dtype=out_dtype)
    y = y.reshape(2, 2, 2, cout, n, d, h, w)                 # (pd,ph,pw,C,N,D,H,W)
    y = jnp.transpose(y, (3, 4, 5, 0, 6, 1, 7, 2))           # (C,N,D,pd,H,ph,W,pw)
    return y.reshape(cout, n, 2 * d, 2 * h, 2 * w)


# ----------------------------------------------------------------------------
# Parameter init (deterministic, synthetic), BN folded into weights host-side.
# ----------------------------------------------------------------------------
def init_params(key, c):
    keys = iter(jax.random.split(key, 64))

    def conv_w(cout, cin, k):
        return 0.1 * jax.random.normal(next(keys), (cout, cin, k, k, k), jnp.float32)

    def deconv_w(cin, cout, k):
        return 0.1 * jax.random.normal(next(keys), (cin, cout, k, k, k), jnp.float32)

    def bn(ch):
        g = 1.0 + 0.1 * jax.random.normal(next(keys), (ch,), jnp.float32)
        b = 0.1 * jax.random.normal(next(keys), (ch,), jnp.float32)
        mn = 0.1 * jax.random.normal(next(keys), (ch,), jnp.float32)
        vr = 0.5 + jnp.abs(jax.random.normal(next(keys), (ch,), jnp.float32))
        return fold_bn(g, b, mn, vr)

    def folded_conv(cout, cin, k):
        w = conv_w(cout, cin, k)
        s, b = bn(cout)
        return conv_w_to_gemm_t(w) * s[:, None], b[:, None]

    p = {}
    p["w1"], p["b1"] = folded_conv(2 * c, c, 3)
    p["w2"], p["b2"] = folded_conv(2 * c, 2 * c, 3)
    p["w3"], p["b3"] = folded_conv(4 * c, 2 * c, 3)
    p["w4"], p["b4"] = folded_conv(4 * c, 4 * c, 3)

    wd5 = deconv_w(4 * c, 2 * c, 3)
    s5, b5 = bn(2 * c)
    wd6 = deconv_w(2 * c, c, 3)
    s6, b6 = bn(c)
    wr1 = conv_w(c, c, 1)
    sr1, br1 = bn(c)
    wr2 = conv_w(2 * c, 2 * c, 1)
    sr2, br2 = bn(2 * c)

    p["w5_big"], p["b5_big"] = build_deconv_phase_params(wd5, s5, b5, wr2, sr2, br2)
    p["w6_big"], p["b6_big"] = build_deconv_phase_params(wd6, s6, b6, wr1, sr1, br1)
    return p


# ----------------------------------------------------------------------------
# Forward pass (matches hourglass.forward)
# ----------------------------------------------------------------------------
def hourglass_forward(x_ncdhw, params):
    # channels-first working layout: (C, N, D, H, W)
    x = jnp.transpose(x_ncdhw, (1, 0, 2, 3, 4)).astype(jnp.bfloat16)

    c1 = conv_bn_mish(x,  params["w1"], params["b1"], 3, 2, 1)   # convbn + Mish
    c2 = conv_bn_mish(c1, params["w2"], params["b2"], 3, 1, 1)
    c3 = conv_bn_mish(c2, params["w3"], params["b3"], 3, 2, 1)
    c4 = conv_bn_mish(c3, params["w4"], params["b4"], 3, 1, 1)

    # conv5 = FMish(deconv5(c4) + redir2(c2)); all 8 phases + redir2 in one GEMM.
    c5 = deconv_phase_fused(c4, c2, params["w5_big"], params["b5_big"],
                            out_dtype=jnp.bfloat16)
    # conv6 = FMish(deconv6(c5) + redir1(x)); all 8 phases + redir1 in one GEMM.
    c6 = deconv_phase_fused(c5, x, params["w6_big"], params["b6_big"],
                            out_dtype=jnp.float32)

    return jnp.transpose(c6, (1, 0, 2, 3, 4))                   # back to NCDHW


# ----------------------------------------------------------------------------
if __name__ == "__main__":
    key = jax.random.PRNGKey(0)
    k_x, k_p = jax.random.split(key)

    N, C, D, H, W = 2, 4, 8, 16, 16          # in_channels = 4 (small synthetic)
    x = jax.random.normal(k_x, (N, C, D, H, W), jnp.float32)
    params = init_params(k_p, C)

    out = jax.jit(hourglass_forward)(x, params)
    out = jax.block_until_ready(out)

    assert out.shape == (N, C, D, H, W), out.shape
    assert bool(jnp.all(jnp.isfinite(out)))
    print("KERNEL_OK")
</pallas_src>

<mosaic_0001>
module attributes {stable_mosaic.version = 11 : i64} {
  func.func @_gemm_bias_act_kernel(%arg0: i32, %arg1: memref<8x108xbf16, #tpu.memory_space<vmem>>, %arg2: memref<108x256xbf16, #tpu.memory_space<vmem>>, %arg3: memref<8x1xf32, #tpu.memory_space<vmem>>, %arg4: memref<8x256xbf16, #tpu.memory_space<vmem>>) attributes {dimension_semantics = [#tpu.dimension_semantics<parallel>], iteration_bounds = array<i64: 2>, scalar_prefetch = 0 : i64, scratch_operands = 0 : i64, tpu.core_type = #tpu.core_type<tc>, window_params = [{pipeline_mode = #tpu.pipeline_mode<synchronous>, transform_indices = @transform_0, window_bounds = array<i64: 8, 108>}, {transform_indices = @transform_1, window_bounds = array<i64: 108, 256>}, {pipeline_mode = #tpu.pipeline_mode<synchronous>, transform_indices = @transform_2, window_bounds = array<i64: 8, 1>}, {transform_indices = @transform_3, window_bounds = array<i64: 8, 256>}]} {
    %c0 = arith.constant 0 : index
    %c0_0 = arith.constant 0 : index
    %0 = vector.load %arg1[%c0, %c0_0] : memref<8x108xbf16, #tpu.memory_space<vmem>>, vector<8x108xbf16>
    %c0_1 = arith.constant 0 : index
    %c0_2 = arith.constant 0 : index
    %1 = vector.load %arg2[%c0_1, %c0_2] : memref<108x256xbf16, #tpu.memory_space<vmem>>, vector<108x256xbf16>
    %cst = arith.constant dense<0.000000e+00> : vector<8x256xf32>
    %2 = tpu.matmul %0, %1, %cst {dimension_numbers = #tpu.dot_dimension_numbers<[1], [0], [0], [1], [0, 0, 1, 1], [], []>} : vector<8x108xbf16>, vector<108x256xbf16>, vector<8x256xf32> -> vector<8x256xf32>
    %c0_3 = arith.constant 0 : index
    %c0_4 = arith.constant 0 : index
    %3 = vector.load %arg3[%c0_3, %c0_4] : memref<8x1xf32, #tpu.memory_space<vmem>>, vector<8x1xf32>
    %4 = vector.broadcast %3 : vector<8x1xf32> to vector<8x256xf32>
    %5 = arith.addf %2, %4 : vector<8x256xf32>
    %cst_5 = arith.constant 2.000000e+01 : f32
    %6 = vector.broadcast %cst_5 : f32 to vector<8x256xf32>
    %7 = arith.minimumf %5, %6 : vector<8x256xf32>
    %8 = math.exp %7 : vector<8x256xf32>
    %cst_6 = arith.constant 1.000000e+00 : f32
    %9 = vector.broadcast %cst_6 : f32 to vector<8x256xf32>
    %10 = arith.addf %8, %9 : vector<8x256xf32>
    %11 = arith.mulf %10, %10 : vector<8x256xf32>
    %cst_7 = arith.constant 1.000000e+00 : f32
    %12 = vector.broadcast %cst_7 : f32 to vector<8x256xf32>
    %13 = arith.addf %11, %12 : vector<8x256xf32>
    %14 = tpu.reciprocal %13 {approx = true} : vector<8x256xf32> -> vector<8x256xf32>
    %cst_8 = arith.constant 2.000000e+00 : f32
    %15 = vector.broadcast %cst_8 : f32 to vector<8x256xf32>
    %16 = arith.mulf %15, %14 : vector<8x256xf32>
    %cst_9 = arith.constant 1.000000e+00 : f32
    %17 = vector.broadcast %cst_9 : f32 to vector<8x256xf32>
    %18 = arith.subf %17, %16 : vector<8x256xf32>
    %19 = arith.mulf %5, %18 : vector<8x256xf32>
    %20 = arith.truncf %19 : vector<8x256xf32> to vector<8x256xbf16>
    %c0_10 = arith.constant 0 : index
    %c0_11 = arith.constant 0 : index
    %21 = vector.load %arg4[%c0_10, %c0_11] : memref<8x256xbf16, #tpu.memory_space<vmem>>, vector<8x256xbf16>
    tpu.vector_store %arg4[%c0_10, %c0_11], %20 {strides = array<i32>} : memref<8x256xbf16, #tpu.memory_space<vmem>>, vector<8x256xbf16>,
    return
  }
  func.func @transform_0(%arg0: i32) -> (i32, i32) {
    %c0_i32 = arith.constant 0 : i32
    %c0_i32_0 = arith.constant 0 : i32
    %c0_i32_1 = arith.constant 0 : i32
    return %c0_i32, %c0_i32_0 : i32, i32
  }
  func.func @transform_1(%arg0: i32) -> (i32, i32) {
    %c0_i32 = arith.constant 0 : i32
    %c0_i32_0 = arith.constant 0 : i32
    return %c0_i32, %arg0 : i32, i32
  }
  func.func @transform_2(%arg0: i32) -> (i32, i32) {
    %c0_i32 = arith.constant 0 : i32
    %c0_i32_0 = arith.constant 0 : i32
    %c0_i32_1 = arith.constant 0 : i32
    return %c0_i32, %c0_i32_0 : i32, i32
  }
  func.func @transform_3(%arg0: i32) -> (i32, i32) {
    %c0_i32 = arith.constant 0 : i32
    %c0_i32_0 = arith.constant 0 : i32
    return %c0_i32, %arg0 : i32, i32
  }
}

module attributes {stable_mosaic.version = 11 : i64} {
  func.func @_gemm_bias_act_kernel(%arg0: i32, %arg1: memref<8x216xbf16, #tpu.memory_space<vmem>>, %arg2: memref<216x256xbf16, #tpu.memory_space<vmem>>, %arg3: memref<8x1xf32, #tpu.memory_space<vmem>>, %arg4: memref<8x256xbf16, #tpu.memory_space<vmem>>) attributes {dimension_semantics = [#tpu.dimension_semantics<parallel>], iteration_bounds = array<i64: 2>, scalar_prefetch = 0 : i64, scratch_operands = 0 : i64, tpu.core_type = #tpu.core_type<tc>, window_params = [{pipeline_mode = #tpu.pipeline_mode<synchronous>, transform_indices = @transform_0, window_bounds = array<i64: 8, 216>}, {transform_indices = @transform_1, window_bounds = array<i64: 216, 256>}, {pipeline_mode = #tpu.pipeline_mode<synchronous>, transform_indices = @transform_2, window_bounds = array<i64: 8, 1>}, {transform_indices = @transform_3, window_bounds = array<i64: 8, 256>}]} {
    %c0 = arith.constant 0 : index
    %c0_0 = arith.constant 0 : index
    %0 = vector.load %arg1[%c0, %c0_0] : memref<8x216xbf16, #tpu.memory_space<vmem>>, vector<8x216xbf16>
    %c0_1 = arith.constant 0 : index
    %c0_2 = arith.constant 0 : index
    %1 = vector.load %arg2[%c0_1, %c0_2] : memref<216x256xbf16, #tpu.memory_space<vmem>>, vector<216x256xbf16>
    %cst = arith.constant dense<0.000000e+00> : vector<8x256xf32>
    %2 = tpu.matmul %0, %1, %cst {dimension_numbers = #tpu.dot_dimension_numbers<[1], [0], [0], [1], [0, 0, 1, 1], [], []>} : vector<8x216xbf16>, vector<216x256xbf16>, vector<8x256xf32> -> vector<8x256xf32>
    %c0_3 = arith.constant 0 : index
    %c0_4 = arith.constant 0 : index
    %3 = vector.load %arg3[%c0_3, %c0_4] : memref<8x1xf32, #tpu.memory_space<vmem>>, vector<8x1xf32>
    %4 = vector.broadcast %3 : vector<8x1xf32> to vector<8x256xf32>
    %5 = arith.addf %2, %4 : vector<8x256xf32>
    %cst_5 = arith.constant 2.000000e+01 : f32
    %6 = vector.broadcast %cst_5 : f32 to vector<8x256xf32>
    %7 = arith.minimumf %5, %6 : vector<8x256xf32>
    %8 = math.exp %7 : vector<8x256xf32>
    %cst_6 = arith.constant 1.000000e+00 : f32
    %9 = vector.broadcast %cst_6 : f32 to vector<8x256xf32>
    %10 = arith.addf %8, %9 : vector<8x256xf32>
    %11 = arith.mulf %10, %10 : vector<8x256xf32>
    %cst_7 = arith.constant 1.000000e+00 : f32
    %12 = vector.broadcast %cst_7 : f32 to vector<8x256xf32>
    %13 = arith.addf %11, %12 : vector<8x256xf32>
    %14 = tpu.reciprocal %13 {approx = true} : vector<8x256xf32> -> vector<8x256xf32>
    %cst_8 = arith.constant 2.000000e+00 : f32
    %15 = vector.broadcast %cst_8 : f32 to vector<8x256xf32>
    %16 = arith.mulf %15, %14 : vector<8x256xf32>
    %cst_9 = arith.constant 1.000000e+00 : f32
    %17 = vector.broadcast %cst_9 : f32 to vector<8x256xf32>
    %18 = arith.subf %17, %16 : vector<8x256xf32>
    %19 = arith.mulf %5, %18 : vector<8x256xf32>
    %20 = arith.truncf %19 : vector<8x256xf32> to vector<8x256xbf16>
    %c0_10 = arith.constant 0 : index
    %c0_11 = arith.constant 0 : index
    %21 = vector.load %arg4[%c0_10, %c0_11] : memref<8x256xbf16, #tpu.memory_space<vmem>>, vector<8x256xbf16>
    tpu.vector_store %arg4[%c0_10, %c0_11], %20 {strides = array<i32>} : memref<8x256xbf16, #tpu.memory_space<vmem>>, vector<8x256xbf16>,
    return
  }
  func.func @transform_0(%arg0: i32) -> (i32, i32) {
    %c0_i32 = arith.constant 0 : i32
    %c0_i32_0 = arith.constant 0 : i32
    %c0_i32_1 = arith.constant 0 : i32
    return %c0_i32, %c0_i32_0 : i32, i32
  }
  func.func @transform_1(%arg0: i32) -> (i32, i32) {
    %c0_i32 = arith.constant 0 : i32
    %c0_i32_0 = arith.constant 0 : i32
    return %c0_i32, %arg0 : i32, i32
  }
  func.func @transform_2(%arg0: i32) -> (i32, i32) {
    %c0_i32 = arith.constant 0 : i32
    %c0_i32_0 = arith.constant 0 : i32
    %c0_i32_1 = arith.constant 0 : i32
    return %c0_i32, %c0_i32_0 : i32, i32
  }
  func.func @transform_3(%arg0: i32) -> (i32, i32) {
    %c0_i32 = arith.constant 0 : i32
    %c0_i32_0 = arith.constant 0 : i32
    return %c0_i32, %arg0 : i32, i32
  }
}

module attributes {stable_mosaic.version = 11 : i64} {
  func.func @_gemm_bias_act_kernel(%arg0: i32, %arg1: memref<16x216xbf16, #tpu.memory_space<vmem>>, %arg2: memref<216x128xbf16, #tpu.memory_space<vmem>>, %arg3: memref<16x1xf32, #tpu.memory_space<vmem>>, %arg4: memref<16x128xbf16, #tpu.memory_space<vmem>>) attributes {dimension_semantics = [#tpu.dimension_semantics<parallel>], iteration_bounds = array<i64: 1>, scalar_prefetch = 0 : i64, scratch_operands = 0 : i64, tpu.core_type = #tpu.core_type<tc>, window_params = [{pipeline_mode = #tpu.pipeline_mode<synchronous>, transform_indices = @transform_0, window_bounds = array<i64: 16, 216>}, {transform_indices = @transform_1, window_bounds = array<i64: 216, 128>}, {pipeline_mode = #tpu.pipeline_mode<synchronous>, transform_indices = @transform_2, window_bounds = array<i64: 16, 1>}, {transform_indices = @transform_3, window_bounds = array<i64: 16, 128>}]} {
    %c0 = arith.constant 0 : index
    %c0_0 = arith.constant 0 : index
    %0 = vector.load %arg1[%c0, %c0_0] : memref<16x216xbf16, #tpu.memory_space<vmem>>, vector<16x216xbf16>
    %c0_1 = arith.constant 0 : index
    %c0_2 = arith.constant 0 : index
    %1 = vector.load %arg2[%c0_1, %c0_2] : memref<216x128xbf16, #tpu.memory_space<vmem>>, vector<216x128xbf16>
    %cst = arith.constant dense<0.000000e+00> : vector<16x128xf32>
    %2 = tpu.matmul %0, %1, %cst {dimension_numbers = #tpu.dot_dimension_numbers<[1], [0], [0], [1], [0, 0, 1, 1], [], []>} : vector<16x216xbf16>, vector<216x128xbf16>, vector<16x128xf32> -> vector<16x128xf32>
    %c0_3 = arith.constant 0 : index
    %c0_4 = arith.constant 0 : index
    %3 = vector.load %arg3[%c0_3, %c0_4] : memref<16x1xf32, #tpu.memory_space<vmem>>, vector<16x1xf32>
    %4 = vector.broadcast %3 : vector<16x1xf32> to vector<16x128xf32>
    %5 = arith.addf %2, %4 : vector<16x128xf32>
    %cst_5 = arith.constant 2.000000e+01 : f32
    %6 = vector.broadcast %cst_5 : f32 to vector<16x128xf32>
    %7 = arith.minimumf %5, %6 : vector<16x128xf32>
    %8 = math.exp %7 : vector<16x128xf32>
    %cst_6 = arith.constant 1.000000e+00 : f32
    %9 = vector.broadcast %cst_6 : f32 to vector<16x128xf32>
    %10 = arith.addf %8, %9 : vector<16x128xf32>
    %11 = arith.mulf %10, %10 : vector<16x128xf32>
    %cst_7 = arith.constant 1.000000e+00 : f32
    %12 = vector.broadcast %cst_7 : f32 to vector<16x128xf32>
    %13 = arith.addf %11, %12 : vector<16x128xf32>
    %14 = tpu.reciprocal %13 {approx = true} : vector<16x128xf32> -> vector<16x128xf32>
    %cst_8 = arith.constant 2.000000e+00 : f32
    %15 = vector.broadcast %cst_8 : f32 to vector<16x128xf32>
    %16 = arith.mulf %15, %14 : vector<16x128xf32>
    %cst_9 = arith.constant 1.000000e+00 : f32
    %17 = vector.broadcast %cst_9 : f32 to vector<16x128xf32>
    %18 = arith.subf %17, %16 : vector<16x128xf32>
    %19 = arith.mulf %5, %18 : vector<16x128xf32>
    %20 = arith.truncf %19 : vector<16x128xf32> to vector<16x128xbf16>
    %c0_10 = arith.constant 0 : index
    %c0_11 = arith.constant 0 : index
    %21 = vector.load %arg4[%c0_10, %c0_11] : memref<16x128xbf16, #tpu.memory_space<vmem>>, vector<16x128xbf16>
    tpu.vector_store %arg4[%c0_10, %c0_11], %20 {strides = array<i32>} : memref<16x128xbf16, #tpu.memory_space<vmem>>, vector<16x128xbf16>,
    return
  }
  func.func @transform_0(%arg0: i32) -> (i32, i32) {
    %c0_i32 = arith.constant 0 : i32
    %c0_i32_0 = arith.constant 0 : i32
    %c0_i32_1 = arith.constant 0 : i32
    return %c0_i32, %c0_i32_0 : i32, i32
  }
  func.func @transform_1(%arg0: i32) -> (i32, i32) {
    %c0_i32 = arith.constant 0 : i32
    %c0_i32_0 = arith.constant 0 : i32
    return %c0_i32, %arg0 : i32, i32
  }
  func.func @transform_2(%arg0: i32) -> (i32, i32) {
    %c0_i32 = arith.constant 0 : i32
    %c0_i32_0 = arith.constant 0 : i32
    %c0_i32_1 = arith.constant 0 : i32
    return %c0_i32, %c0_i32_0 : i32, i32
  }
  func.func @transform_3(%arg0: i32) -> (i32, i32) {
    %c0_i32 = arith.constant 0 : i32
    %c0_i32_0 = arith.constant 0 : i32
    return %c0_i32, %arg0 : i32, i32
  }
}

module attributes {stable_mosaic.version = 11 : i64} {
  func.func @_gemm_bias_act_kernel(%arg0: i32, %arg1: memref<16x432xbf16, #tpu.memory_space<vmem>>, %arg2: memref<432x128xbf16, #tpu.memory_space<vmem>>, %arg3: memref<16x1xf32, #tpu.memory_space<vmem>>, %arg4: memref<16x128xbf16, #tpu.memory_space<vmem>>) attributes {dimension_semantics = [#tpu.dimension_semantics<parallel>], iteration_bounds = array<i64: 1>, scalar_prefetch = 0 : i64, scratch_operands = 0 : i64, tpu.core_type = #tpu.core_type<tc>, window_params = [{pipeline_mode = #tpu.pipeline_mode<synchronous>, transform_indices = @transform_0, window_bounds = array<i64: 16, 432>}, {transform_indices = @transform_1, window_bounds = array<i64: 432, 128>}, {pipeline_mode = #tpu.pipeline_mode<synchronous>, transform_indices = @transform_2, window_bounds = array<i64: 16, 1>}, {transform_indices = @transform_3, window_bounds = array<i64: 16, 128>}]} {
    %c0 = arith.constant 0 : index
    %c0_0 = arith.constant 0 : index
    %0 = vector.load %arg1[%c0, %c0_0] : memref<16x432xbf16, #tpu.memory_space<vmem>>, vector<16x432xbf16>
    %c0_1 = arith.constant 0 : index
    %c0_2 = arith.constant 0 : index
    %1 = vector.load %arg2[%c0_1, %c0_2] : memref<432x128xbf16, #tpu.memory_space<vmem>>, vector<432x128xbf16>
    %cst = arith.constant dense<0.000000e+00> : vector<16x128xf32>
    %2 = tpu.matmul %0, %1, %cst {dimension_numbers = #tpu.dot_dimension_numbers<[1], [0], [0], [1], [0, 0, 1, 1], [], []>} : vector<16x432xbf16>, vector<432x128xbf16>, vector<16x128xf32> -> vector<16x128xf32>
    %c0_3 = arith.constant 0 : index
    %c0_4 = arith.constant 0 : index
    %3 = vector.load %arg3[%c0_3, %c0_4] : memref<16x1xf32, #tpu.memory_space<vmem>>, vector<16x1xf32>
    %4 = vector.broadcast %3 : vector<16x1xf32> to vector<16x128xf32>
    %5 = arith.addf %2, %4 : vector<16x128xf32>
    %cst_5 = arith.constant 2.000000e+01 : f32
    %6 = vector.broadcast %cst_5 : f32 to vector<16x128xf32>
    %7 = arith.minimumf %5, %6 : vector<16x128xf32>
    %8 = math.exp %7 : vector<16x128xf32>
    %cst_6 = arith.constant 1.000000e+00 : f32
    %9 = vector.broadcast %cst_6 : f32 to vector<16x128xf32>
    %10 = arith.addf %8, %9 : vector<16x128xf32>
    %11 = arith.mulf %10, %10 : vector<16x128xf32>
    %cst_7 = arith.constant 1.000000e+00 : f32
    %12 = vector.broadcast %cst_7 : f32 to vector<16x128xf32>
    %13 = arith.addf %11, %12 : vector<16x128xf32>
    %14 = tpu.reciprocal %13 {approx = true} : vector<16x128xf32> -> vector<16x128xf32>
    %cst_8 = arith.constant 2.000000e+00 : f32
    %15 = vector.broadcast %cst_8 : f32 to vector<16x128xf32>
    %16 = arith.mulf %15, %14 : vector<16x128xf32>
    %cst_9 = arith.constant 1.000000e+00 : f32
    %17 = vector.broadcast %cst_9 : f32 to vector<16x128xf32>
    %18 = arith.subf %17, %16 : vector<16x128xf32>
    %19 = arith.mulf %5, %18 : vector<16x128xf32>
    %20 = arith.truncf %19 : vector<16x128xf32> to vector<16x128xbf16>
    %c0_10 = arith.constant 0 : index
    %c0_11 = arith.constant 0 : index
    %21 = vector.load %arg4[%c0_10, %c0_11] : memref<16x128xbf16, #tpu.memory_space<vmem>>, vector<16x128xbf16>
    tpu.vector_store %arg4[%c0_10, %c0_11], %20 {strides = array<i32>} : memref<16x128xbf16, #tpu.memory_space<vmem>>, vector<16x128xbf16>,
    return
  }
  func.func @transform_0(%arg0: i32) -> (i32, i32) {
    %c0_i32 = arith.constant 0 : i32
    %c0_i32_0 = arith.constant 0 : i32
    %c0_i32_1 = arith.constant 0 : i32
    return %c0_i32, %c0_i32_0 : i32, i32
  }
  func.func @transform_1(%arg0: i32) -> (i32, i32) {
    %c0_i32 = arith.constant 0 : i32
    %c0_i32_0 = arith.constant 0 : i32
    return %c0_i32, %arg0 : i32, i32
  }
  func.func @transform_2(%arg0: i32) -> (i32, i32) {
    %c0_i32 = arith.constant 0 : i32
    %c0_i32_0 = arith.constant 0 : i32
    %c0_i32_1 = arith.constant 0 : i32
    return %c0_i32, %c0_i32_0 : i32, i32
  }
  func.func @transform_3(%arg0: i32) -> (i32, i32) {
    %c0_i32 = arith.constant 0 : i32
    %c0_i32_0 = arith.constant 0 : i32
    return %c0_i32, %arg0 : i32, i32
  }
}

module attributes {stable_mosaic.version = 11 : i64} {
  func.func @_gemm_bias_act_kernel(%arg0: i32, %arg1: memref<64x192xbf16, #tpu.memory_space<vmem>>, %arg2: memref<192x128xbf16, #tpu.memory_space<vmem>>, %arg3: memref<64x1xf32, #tpu.memory_space<vmem>>, %arg4: memref<64x128xbf16, #tpu.memory_space<vmem>>) attributes {dimension_semantics = [#tpu.dimension_semantics<parallel>], iteration_bounds = array<i64: 1>, scalar_prefetch = 0 : i64, scratch_operands = 0 : i64, tpu.core_type = #tpu.core_type<tc>, window_params = [{pipeline_mode = #tpu.pipeline_mode<synchronous>, transform_indices = @transform_0, window_bounds = array<i64: 64, 192>}, {transform_indices = @transform_1, window_bounds = array<i64: 192, 128>}, {pipeline_mode = #tpu.pipeline_mode<synchronous>, transform_indices = @transform_2, window_bounds = array<i64: 64, 1>}, {transform_indices = @transform_3, window_bounds = array<i64: 64, 128>}]} {
    %c0 = arith.constant 0 : index
    %c0_0 = arith.constant 0 : index
    %0 = vector.load %arg1[%c0, %c0_0] : memref<64x192xbf16, #tpu.memory_space<vmem>>, vector<64x192xbf16>
    %c0_1 = arith.constant 0 : index
    %c0_2 = arith.constant 0 : index
    %1 = vector.load %arg2[%c0_1, %c0_2] : memref<192x128xbf16, #tpu.memory_space<vmem>>, vector<192x128xbf16>
    %cst = arith.constant dense<0.000000e+00> : vector<64x128xf32>
    %2 = tpu.matmul %0, %1, %cst {dimension_numbers = #tpu.dot_dimension_numbers<[1], [0], [0], [1], [0, 0, 1, 1], [], []>} : vector<64x192xbf16>, vector<192x128xbf16>, vector<64x128xf32> -> vector<64x128xf32>
    %c0_3 = arith.constant 0 : index
    %c0_4 = arith.constant 0 : index
    %3 = vector.load %arg3[%c0_3, %c0_4] : memref<64x1xf32, #tpu.memory_space<vmem>>, vector<64x1xf32>
    %4 = vector.broadcast %3 : vector<64x1xf32> to vector<64x128xf32>
    %5 = arith.addf %2, %4 : vector<64x128xf32>
    %cst_5 = arith.constant 2.000000e+01 : f32
    %6 = vector.broadcast %cst_5 : f32 to vector<64x128xf32>
    %7 = arith.minimumf %5, %6 : vector<64x128xf32>
    %8 = math.exp %7 : vector<64x128xf32>
    %cst_6 = arith.constant 1.000000e+00 : f32
    %9 = vector.broadcast %cst_6 : f32 to vector<64x128xf32>
    %10 = arith.addf %8, %9 : vector<64x128xf32>
    %11 = arith.mulf %10, %10 : vector<64x128xf32>
    %cst_7 = arith.constant 1.000000e+00 : f32
    %12 = vector.broadcast %cst_7 : f32 to vector<64x128xf32>
    %13 = arith.addf %11, %12 : vector<64x128xf32>
    %14 = tpu.reciprocal %13 {approx = true} : vector<64x128xf32> -> vector<64x128xf32>
    %cst_8 = arith.constant 2.000000e+00 : f32
    %15 = vector.broadcast %cst_8 : f32 to vector<64x128xf32>
    %16 = arith.mulf %15, %14 : vector<64x128xf32>
    %cst_9 = arith.constant 1.000000e+00 : f32
    %17 = vector.broadcast %cst_9 : f32 to vector<64x128xf32>
    %18 = arith.subf %17, %16 : vector<64x128xf32>
    %19 = arith.mulf %5, %18 : vector<64x128xf32>
    %20 = arith.truncf %19 : vector<64x128xf32> to vector<64x128xbf16>
    %c0_10 = arith.constant 0 : index
    %c0_11 = arith.constant 0 : index
    %21 = vector.load %arg4[%c0_10, %c0_11] : memref<64x128xbf16, #tpu.memory_space<vmem>>, vector<64x128xbf16>
    tpu.vector_store %arg4[%c0_10, %c0_11], %20 {strides = array<i32>} : memref<64x128xbf16, #tpu.memory_space<vmem>>, vector<64x128xbf16>,
    return
  }
  func.func @transform_0(%arg0: i32) -> (i32, i32) {
    %c0_i32 = arith.constant 0 : i32
    %c0_i32_0 = arith.constant 0 : i32
    %c0_i32_1 = arith.constant 0 : i32
    return %c0_i32, %c0_i32_0 : i32, i32
  }
  func.func @transform_1(%arg0: i32) -> (i32, i32) {
    %c0_i32 = arith.constant 0 : i32
    %c0_i32_0 = arith.constant 0 : i32
    return %c0_i32, %arg0 : i32, i32
  }
  func.func @transform_2(%arg0: i32) -> (i32, i32) {
    %c0_i32 = arith.constant 0 : i32
    %c0_i32_0 = arith.constant 0 : i32
    %c0_i32_1 = arith.constant 0 : i32
    return %c0_i32, %c0_i32_0 : i32, i32
  }
  func.func @transform_3(%arg0: i32) -> (i32, i32) {
    %c0_i32 = arith.constant 0 : i32
    %c0_i32_0 = arith.constant 0 : i32
    return %c0_i32, %arg0 : i32, i32
  }
}

module attributes {stable_mosaic.version = 11 : i64} {
  func.func @_gemm_bias_act_kernel(%arg0: i32, %arg1: memref<32x96xbf16, #tpu.memory_space<vmem>>, %arg2: memref<96x256xbf16, #tpu.memory_space<vmem>>, %arg3: memref<32x1xf32, #tpu.memory_space<vmem>>, %arg4: memref<32x256xf32, #tpu.memory_space<vmem>>) attributes {dimension_semantics = [#tpu.dimension_semantics<parallel>], iteration_bounds = array<i64: 2>, scalar_prefetch = 0 : i64, scratch_operands = 0 : i64, tpu.core_type = #tpu.core_type<tc>, window_params = [{pipeline_mode = #tpu.pipeline_mode<synchronous>, transform_indices = @transform_0, window_bounds = array<i64: 32, 96>}, {transform_indices = @transform_1, window_bounds = array<i64: 96, 256>}, {pipeline_mode = #tpu.pipeline_mode<synchronous>, transform_indices = @transform_2, window_bounds = array<i64: 32, 1>}, {transform_indices = @transform_3, window_bounds = array<i64: 32, 256>}]} {
    %c0 = arith.constant 0 : index
    %c0_0 = arith.constant 0 : index
    %0 = vector.load %arg1[%c0, %c0_0] : memref<32x96xbf16, #tpu.memory_space<vmem>>, vector<32x96xbf16>
    %c0_1 = arith.constant 0 : index
    %c0_2 = arith.constant 0 : index
    %1 = vector.load %arg2[%c0_1, %c0_2] : memref<96x256xbf16, #tpu.memory_space<vmem>>, vector<96x256xbf16>
    %cst = arith.constant dense<0.000000e+00> : vector<32x256xf32>
    %2 = tpu.matmul %0, %1, %cst {dimension_numbers = #tpu.dot_dimension_numbers<[1], [0], [0], [1], [0, 0, 1, 1], [], []>} : vector<32x96xbf16>, vector<96x256xbf16>, vector<32x256xf32> -> vector<32x256xf32>
    %c0_3 = arith.constant 0 : index
    %c0_4 = arith.constant 0 : index
    %3 = vector.load %arg3[%c0_3, %c0_4] : memref<32x1xf32, #tpu.memory_space<vmem>>, vector<32x1xf32>
    %4 = vector.broadcast %3 : vector<32x1xf32> to vector<32x256xf32>
    %5 = arith.addf %2, %4 : vector<32x256xf32>
    %cst_5 = arith.constant 2.000000e+01 : f32
    %6 = vector.broadcast %cst_5 : f32 to vector<32x256xf32>
    %7 = arith.minimumf %5, %6 : vector<32x256xf32>
    %8 = math.exp %7 : vector<32x256xf32>
    %cst_6 = arith.constant 1.000000e+00 : f32
    %9 = vector.broadcast %cst_6 : f32 to vector<32x256xf32>
    %10 = arith.addf %8, %9 : vector<32x256xf32>
    %11 = arith.mulf %10, %10 : vector<32x256xf32>
    %cst_7 = arith.constant 1.000000e+00 : f32
    %12 = vector.broadcast %cst_7 : f32 to vector<32x256xf32>
    %13 = arith.addf %11, %12 : vector<32x256xf32>
    %14 = tpu.reciprocal %13 {approx = true} : vector<32x256xf32> -> vector<32x256xf32>
    %cst_8 = arith.constant 2.000000e+00 : f32
    %15 = vector.broadcast %cst_8 : f32 to vector<32x256xf32>
    %16 = arith.mulf %15, %14 : vector<32x256xf32>
    %cst_9 = arith.constant 1.000000e+00 : f32
    %17 = vector.broadcast %cst_9 : f32 to vector<32x256xf32>
    %18 = arith.subf %17, %16 : vector<32x256xf32>
    %19 = arith.mulf %5, %18 : vector<32x256xf32>
    %c0_10 = arith.constant 0 : index
    %c0_11 = arith.constant 0 : index
    %20 = vector.load %arg4[%c0_10, %c0_11] : memref<32x256xf32, #tpu.memory_space<vmem>>, vector<32x256xf32>
    tpu.vector_store %arg4[%c0_10, %c0_11], %19 {strides = array<i32>} : memref<32x256xf32, #tpu.memory_space<vmem>>, vector<32x256xf32>,
    return
  }
  func.func @transform_0(%arg0: i32) -> (i32, i32) {
    %c0_i32 = arith.constant 0 : i32
    %c0_i32_0 = arith.constant 0 : i32
    %c0_i32_1 = arith.constant 0 : i32
    return %c0_i32, %c0_i32_0 : i32, i32
  }
  func.func @transform_1(%arg0: i32) -> (i32, i32) {
    %c0_i32 = arith.constant 0 : i32
    %c0_i32_0 = arith.constant 0 : i32
    return %c0_i32, %arg0 : i32, i32
  }
  func.func @transform_2(%arg0: i32) -> (i32, i32) {
    %c0_i32 = arith.constant 0 : i32
    %c0_i32_0 = arith.constant 0 : i32
    %c0_i32_1 = arith.constant 0 : i32
    return %c0_i32, %c0_i32_0 : i32, i32
  }
  func.func @transform_3(%arg0: i32) -> (i32, i32) {
    %c0_i32 = arith.constant 0 : i32
    %c0_i32_0 = arith.constant 0 : i32
    return %c0_i32, %arg0 : i32, i32
  }
}

</mosaic_0001>

<llo_original>
// kernel: hourglass_forward.6
$region0: #{hourglass_forward.6}
  #allocation0 [shape = 'u32[]', space=smem, size = 0x4, offset = 0x4, fixed_abs, tag = 'smem constant byte address 0x4 - core index']
  #allocation1 [shape = 'u32[144,128]{1,0:T(1,128)}', space=vmem, size = 0x12000, scoped, tag = 'internal scratch']
  %s0 = inlined_call_operand.vmem [shape: bf16[8,108], index: 0, kind: input, shape index: {}]
  %s1 = inlined_call_operand.vmem [shape: bf16[108,512], index: 1, kind: input, shape index: {}]
  %s2 = inlined_call_operand.vmem [shape: f32[8,1], index: 2, kind: input, shape index: {}]
  %s3 = inlined_call_operand.vmem [shape: bf16[8,512], index: 3, kind: output, shape index: {}]
  %s4 = sld [smem:[#allocation0]]
  $region83: #{hourglass_forward.6} parent=0
    _
  %s6 = ssub.s32 1, %s4
  %s7 = scalar_select 0, %s6, %s4
  $region1: #{hourglass_forward.6} parent=0
    #allocation2 [shape = 'u8[114688]{0}', space=vmem, size = 0x1c000, scoped, tag = 'input window, operand 1']
    loop: start=0, step=1, limit=4
    $region2: #{hourglass_forward.6} parent=1 // loop_pre_header
      _
    $region3: #{hourglass_forward.6} parent=1 // loop_header
      %s9 = sphi 0, %s13
      %p10 = scmp.ge.s32.totalorder %s9, 4
      %s17 = sphi 0, %s17
      %s19 = sphi 0, %s17
      %s20 = sphi 0, %s19
      %s34 = sphi 0, %s20
      %s40 = sphi 0, %s42
      %s43 = sphi 0, %s40
      %s44 = sphi 0, %s43
      %s60 = sphi 0, %s44
      %s64 = sphi 0, %s64
      %s66 = sphi 0, %s64
      %s67 = sphi 0, %s66
      %s81 = sphi 0, %s67
      %s87 = sphi 0, %s89
      %s90 = sphi 0, %s87
      %s91 = sphi 0, %s90
      %s107 = sphi 0, %s91
    $region4: #{hourglass_forward.6} parent=1 // loop_header_branch
      %12 = sbr.rel (%p10) target = $region8
    $region5: #{hourglass_forward.6} parent=1 // loop_body
      %s14 = ssub.s32 %s9, 1
      %s15 = ssub.s32 %s9, 2
      %s16 = sadd.s32 %s9, 1
      %s18 = sadd.s32 %s17, 1
      %p21 = scmp.eq.s32.totalorder %s9, 1
      %p22 = scmp.ne.s32.totalorder %s17, %s19
      %p23 = scmp.eq.s32.totalorder %s9, 0
      %p24 = por %p22, %p23
      %p25 = scmp.ne.s32.totalorder %s17, %s19
      %p26 = scmp.eq.s32.totalorder %s14, 1
      %p27 = por %p25, %p26
      %p28 = scmp.ne.s32.totalorder %s19, %s20
      %p29 = scmp.eq.s32.totalorder %s14, 0
      %p30 = por %p28, %p29
      %p31 = scmp.ne.s32.totalorder %s19, %s20
      %p32 = scmp.eq.s32.totalorder %s15, 1
      %p33 = por %p31, %p32
      %p35 = scmp.ne.s32.totalorder %s20, %s34
      %p36 = scmp.eq.s32.totalorder %s15, 0
      %p37 = por %p35, %p36
      %s38 = ssub.s32 %s9, %s16
      %p39 = scmp.eq.s32.totalorder %s38, 0
      %s41 = sadd.s32 %s40, 1
      %s42 = scalar_select %p39, %s40, %s41
      %p45 = pneg %p39
      %p46 = scmp.eq.s32.totalorder %s9, 1
      %p47 = por %p45, %p46
      %p48 = scmp.ne.s32.totalorder %s40, %s43
      %p49 = scmp.eq.s32.totalorder %s9, 0
      %p50 = por %p48, %p49
      %p51 = scmp.ne.s32.totalorder %s40, %s43
      %p52 = scmp.eq.s32.totalorder %s14, 1
      %p53 = por %p51, %p52
      %p54 = scmp.ne.s32.totalorder %s43, %s44
      %p55 = scmp.eq.s32.totalorder %s14, 0
      %p56 = por %p54, %p55
      %p57 = scmp.ne.s32.totalorder %s43, %s44
      %p58 = scmp.eq.s32.totalorder %s15, 1
      %p59 = por %p57, %p58
      %p61 = scmp.ne.s32.totalorder %s44, %s60
      %p62 = scmp.eq.s32.totalorder %s15, 0
      %p63 = por %p61, %p62
      %s65 = sadd.s32 %s64, 1
      %p68 = scmp.eq.s32.totalorder %s9, 1
      %p69 = scmp.ne.s32.totalorder %s64, %s66
      %p70 = scmp.eq.s32.totalorder %s9, 0
      %p71 = por %p69, %p70
      %p72 = scmp.ne.s32.totalorder %s64, %s66
      %p73 = scmp.eq.s32.totalorder %s14, 1
      %p74 = por %p72, %p73
      %p75 = scmp.ne.s32.totalorder %s66, %s67
      %p76 = scmp.eq.s32.totalorder %s14, 0
      %p77 = por %p75, %p76
      %p78 = scmp.ne.s32.totalorder %s66, %s67
      %p79 = scmp.eq.s32.totalorder %s15, 1
      %p80 = por %p78, %p79
      %p82 = scmp.ne.s32.totalorder %s67, %s81
      %p83 = scmp.eq.s32.totalorder %s15, 0
      %p84 = por %p82, %p83
      %s85 = ssub.s32 %s9, %s16
      %p86 = scmp.eq.s32.totalorder %s85, 0
      %s88 = sadd.s32 %s87, 1
      %s89 = scalar_select %p86, %s87, %s88
      %p92 = pneg %p86
      %p93 = scmp.eq.s32.totalorder %s9, 1
      %p94 = por %p92, %p93
      %p95 = scmp.ne.s32.totalorder %s87, %s90
      %p96 = scmp.eq.s32.totalorder %s9, 0
      %p97 = por %p95, %p96
      %p98 = scmp.ne.s32.totalorder %s87, %s90
      %p99 = scmp.eq.s32.totalorder %s14, 1
      %p100 = por %p98, %p99
      %p101 = scmp.ne.s32.totalorder %s90, %s91
      %p102 = scmp.eq.s32.totalorder %s14, 0
      %p103 = por %p101, %p102
      %p104 = scmp.ne.s32.totalorder %s90, %s91
      %p105 = scmp.eq.s32.totalorder %s15, 1
      %p106 = por %p104, %p105
      %p108 = scmp.ne.s32.totalorder %s91, %s107
      %p109 = scmp.eq.s32.totalorder %s15, 0
      %p110 = por %p108, %p109
      %p111 = scmp.le.s32.totalorder 1, %s9
      %p112 = scmp.lt.s32.totalorder %s9, 3
      %p113 = pnand %p111, %p112
      %p114 = pneg %p113
      // Predicated region
      $region9: #{hourglass_forward.6} parent=5 // pred_check
        _
      $region10: #{hourglass_forward.6} parent=5 // pred_check_branch
        %116 = sbr.rel (%p113) target = $region12
      $region11: #{hourglass_forward.6} parent=5 // pred_region
        %s117 = ssub.s32 %s9, 1
        // Predicated region
        $region13: #{hourglass_forward.6} parent=11 // pred_check
          %p118 = pneg %p30
        $region14: #{hourglass_forward.6} parent=11 // pred_check_branch
          %120 = sbr.rel (%p118) target = $region16
        $region15: #{hourglass_forward.6} parent=11 // pred_region
          _
        $region16: #{hourglass_forward.6} parent=11 // pred_fallthru
          _
        // Predicated region
        $region17: #{hourglass_forward.6} parent=11 // pred_check
          %p121 = pneg %p77
        $region18: #{hourglass_forward.6} parent=11 // pred_check_branch
          %123 = sbr.rel (%p121) target = $region20
        $region19: #{hourglass_forward.6} parent=11 // pred_region
          _
        $region20: #{hourglass_forward.6} parent=11 // pred_fallthru
          _
      $region12: #{hourglass_forward.6} parent=5 // pred_fallthru
        _
      %p124 = scmp.lt.s32.totalorder %s9, 2
      // Predicated region
      $region21: #{hourglass_forward.6} parent=5 // pred_check
        %p125 = pneg %p124
      $region22: #{hourglass_forward.6} parent=5 // pred_check_branch
        %127 = sbr.rel (%p125) target = $region24
      $region23: #{hourglass_forward.6} parent=5 // pred_region
        // Predicated region
        $region25: #{hourglass_forward.6} parent=23 // pred_check
          %p128 = pneg %p50
        $region26: #{hourglass_forward.6} parent=23 // pred_check_branch
          %130 = sbr.rel (%p128) target = $region28
        $region27: #{hourglass_forward.6} parent=23 // pred_region
          %s131 = sand.u32 %s40, 1
          %s132 = sand.u32 %s40, 1
          %s133 = smul.addr %s132, 112
          %s134 = scalar_lea.vmem [#allocation2], %s133
          %s135 = smul.u32 2, %s9
          %s136 = smul.addr %s135, 4
          %s137 = scalar_lea.vmem %s1, %s136
          // Predicated region
          $region29: #{hourglass_forward.6} parent=27 // pred_check
            _
          $region30: #{hourglass_forward.6} parent=27 // pred_check_branch
            %139 = sbr.rel (0) target = $region32
          $region31: #{hourglass_forward.6} parent=27 // pred_region
            // Predicated region
            $region33: #{hourglass_forward.6} parent=31 // pred_check
              _
            $region34: #{hourglass_forward.6} parent=31 // pred_check_branch
              %141 = sbr.rel (0) target = $region36
            $region35: #{hourglass_forward.6} parent=31 // pred_region
              // Predicated region
              $region48: #{hourglass_forward.6} parent=35 // pred_check
                _
              $region49: #{hourglass_forward.6} parent=35 // pred_check_branch
                %182 = sbr.rel (0) target = $region51
              $region50: #{hourglass_forward.6} parent=35 // pred_region
                loop: start=0, step=1, limit=1
                $region52: #{hourglass_forward.6} parent=50 // loop_pre_header
                  _
                $region53: #{hourglass_forward.6} parent=50 // loop_header
                  %s184 = sphi 0, %s188
                  %p185 = scmp.ge.s32.totalorder %s184, 1
                  %s189 = sphi %s137, %s137
                  %s190 = sphi %s134, %s134
                $region54: #{hourglass_forward.6} parent=50 // loop_header_branch
                  %187 = sbr.rel (%p185) target = $region58
                $region55: #{hourglass_forward.6} parent=50 // loop_body
                  %v191 = vld [vmem:[%s189] sm:$0xff]
                  %192 = vst [vmem:[%s190] sm:$0xff] %v191
                  %v193 = vld [vmem:[%s189 + $0x10] sm:$0xff]
                  %194 = vst [vmem:[%s190 + $0x8] sm:$0xff] %v193
                  %v195 = vld [vmem:[%s189 + $0x20] sm:$0xff]
                  %196 = vst [vmem:[%s190 + $0x10] sm:$0xff] %v195
                  %v197 = vld [vmem:[%s189 + $0x30] sm:$0xff]
                  %198 = vst [vmem:[%s190 + $0x18] sm:$0xff] %v197
                  %v199 = vld [vmem:[%s189 + $0x40] sm:$0xff]
                  %200 = vst [vmem:[%s190 + $0x20] sm:$0xff] %v199
                  %v201 = vld [vmem:[%s189 + $0x50] sm:$0xff]
                  %202 = vst [vmem:[%s190 + $0x28] sm:$0xff] %v201
                  %v203 = vld [vmem:[%s189 + $0x60] sm:$0xff]
                  %204 = vst [vmem:[%s190 + $0x30] sm:$0xff] %v203
                  %v205 = vld [vmem:[%s189 + $0x70] sm:$0xff]
                  %206 = vst [vmem:[%s190 + $0x38] sm:$0xff] %v205
                  %v207 = vld [vmem:[%s189 + $0x80] sm:$0xff]
                  %208 = vst [vmem:[%s190 + $0x40] sm:$0xff] %v207
                  %v209 = vld [vmem:[%s189 + $0x90] sm:$0xff]
                  %210 = vst [vmem:[%s190 + $0x48] sm:$0xff] %v209
                  %v211 = vld [vmem:[%s189 + $0xa0] sm:$0xff]
                  %212 = vst [vmem:[%s190 + $0x50] sm:$0xff] %v211
                  %v213 = vld [vmem:[%s189 + $0xb0] sm:$0xff]
                  %214 = vst [vmem:[%s190 + $0x58] sm:$0xff] %v213
                  %v215 = vld [vmem:[%s189 + $0xc0] sm:$0xff]
                  %216 = vst [vmem:[%s190 + $0x60] sm:$0xff] %v215
                  %v217 = vld [vmem:[%s189 + $0xd0] sm:$0xff]
                  %218 = vst [vmem:[%s190 + $0x68] sm:$0xff] %v217
                $region56: #{hourglass_forward.6} parent=50 // loop_footer
                  %s188 = sadd.s32 1, %s184
                $region57: #{hourglass_forward.6} parent=50 // loop_footer_branch
                  %183 = sbr.rel target = $region53
                $region58: #{hourglass_forward.6} parent=50 // loop_exit
                  _
              $region51: #{hourglass_forward.6} parent=35 // pred_fallthru
                _
              // Predicated region
              $region59: #{hourglass_forward.6} parent=35 // pred_check
                _
              $region60: #{hourglass_forward.6} parent=35 // pred_check_branch
                %220 = sbr.rel target = $region62
              $region61: #{hourglass_forward.6} parent=35 // pred_region
                _
              $region62: #{hourglass_forward.6} parent=35 // pred_fallthru
                _
            $region36: #{hourglass_forward.6} parent=31 // pred_fallthru
              _
            // Predicated region
            $region37: #{hourglass_forward.6} parent=31 // pred_check
              _
            $region38: #{hourglass_forward.6} parent=31 // pred_check_branch
              %143 = sbr.rel target = $region40
            $region39: #{hourglass_forward.6} parent=31 // pred_region
              loop: start=0, step=1, limit=1
              $region41: #{hourglass_forward.6} parent=39 // loop_pre_header
                _
              $region42: #{hourglass_forward.6} parent=39 // loop_header
                %s146 = sphi 0, %s150
                %p147 = scmp.ge.s32.totalorder %s146, 1
                %s151 = sphi %s137, %s137
                %s152 = sphi %s134, %s134
              $region43: #{hourglass_forward.6} parent=39 // loop_header_branch
                %149 = sbr.rel (%p147) target = $region47
              $region44: #{hourglass_forward.6} parent=39 // loop_body
                %v153 = vld [vmem:[%s151] sm:$0xff]
                %154 = vst [vmem:[%s152] sm:$0xff] %v153
                %v155 = vld [vmem:[%s151 + $0x10] sm:$0xff]
                %156 = vst [vmem:[%s152 + $0x8] sm:$0xff] %v155
                %v157 = vld [vmem:[%s151 + $0x20] sm:$0xff]
                %158 = vst [vmem:[%s152 + $0x10] sm:$0xff] %v157
                %v159 = vld [vmem:[%s151 + $0x30] sm:$0xff]
                %160 = vst [vmem:[%s152 + $0x18] sm:$0xff] %v159
                %v161 = vld [vmem:[%s151 + $0x40] sm:$0xff]
                %162 = vst [vmem:[%s152 + $0x20] sm:$0xff] %v161
                %v163 = vld [vmem:[%s151 + $0x50] sm:$0xff]
                %164 = vst [vmem:[%s152 + $0x28] sm:$0xff] %v163
                %v165 = vld [vmem:[%s151 + $0x60] sm:$0xff]
                %166 = vst [vmem:[%s152 + $0x30] sm:$0xff] %v165
                %v167 = vld [vmem:[%s151 + $0x70] sm:$0xff]
                %168 = vst [vmem:[%s152 + $0x38] sm:$0xff] %v167
                %v169 = vld [vmem:[%s151 + $0x80] sm:$0xff]
                %170 = vst [vmem:[%s152 + $0x40] sm:$0xff] %v169
                %v171 = vld [vmem:[%s151 + $0x90] sm:$0xff]
                %172 = vst [vmem:[%s152 + $0x48] sm:$0xff] %v171
                %v173 = vld [vmem:[%s151 + $0xa0] sm:$0xff]
                %174 = vst [vmem:[%s152 + $0x50] sm:$0xff] %v173
                %v175 = vld [vmem:[%s151 + $0xb0] sm:$0xff]
                %176 = vst [vmem:[%s152 + $0x58] sm:$0xff] %v175
                %v177 = vld [vmem:[%s151 + $0xc0] sm:$0xff]
                %178 = vst [vmem:[%s152 + $0x60] sm:$0xff] %v177
                %v179 = vld [vmem:[%s151 + $0xd0] sm:$0xff]
                %180 = vst [vmem:[%s152 + $0x68] sm:$0xff] %v179
              $region45: #{hourglass_forward.6} parent=39 // loop_footer
                %s150 = sadd.s32 1, %s146
              $region46: #{hourglass_forward.6} parent=39 // loop_footer_branch
                %145 = sbr.rel target = $region42
              $region47: #{hourglass_forward.6} parent=39 // loop_exit
                _
            $region40: #{hourglass_forward.6} parent=31 // pred_fallthru
              _
          $region32: #{hourglass_forward.6} parent=27 // pred_fallthru
            _
          %221 = vnop
        $region28: #{hourglass_forward.6} parent=23 // pred_fallthru
          _
      $region24: #{hourglass_forward.6} parent=5 // pred_fallthru
        _
      %p222 = scmp.le.s32.totalorder 1, %s9
      %p223 = scmp.lt.s32.totalorder %s9, 3
      %p224 = pnand %p222, %p223
      %p225 = pneg %p224
      // Predicated region
      $region63: #{hourglass_forward.6} parent=5 // pred_check
        _
      $region64: #{hourglass_forward.6} parent=5 // pred_check_branch
        %227 = sbr.rel (%p224) target = $region66
      $region65: #{hourglass_forward.6} parent=5 // pred_region
        %s228 = ssub.s32 %s9, 1
        %s229 = sand.u32 %s43, 1
        %s230 = sand.u32 %s43, 1
        %s231 = smul.addr %s230, 112
        %s232 = scalar_lea.vmem [#allocation2], %s231
        // Predicated region
        $region67: #{hourglass_forward.6} parent=65 // pred_check
          %p233 = pneg %p56
        $region68: #{hourglass_forward.6} parent=65 // pred_check_branch
          %235 = sbr.rel (%p233) target = $region70
        $region69: #{hourglass_forward.6} parent=65 // pred_region
          _
        $region70: #{hourglass_forward.6} parent=65 // pred_fallthru
          _
        %p236 = pneg %p30
        %p237 = pneg %p27
        %s238 = sand.u32 %s43, 1
        %s239 = sand.u32 %s43, 1
        %s240 = smul.addr %s239, 112
        %s241 = scalar_lea.vmem [#allocation2], %s240
        %p242 = pneg %p56
        %p243 = pneg %p53
        %p244 = pneg %p77
        %p245 = pneg %p74
        %p246 = pneg %p103
        %p247 = pneg %p100
        %s248 = smul.u32 2, %s14
        %p249 = scmp.lt.s32.totalorder %s248, 3
        %s250 = scalar_select %p249, %s248, 3
        %s251 = smul.addr %s250, 4
        %s252 = scalar_lea.vmem %s3, %s251
        %s253 = smul.u32 2, %s14
        %s254 = smul.u32 2, %s14
        %p255 = scmp.lt.s32.totalorder %s254, 3
        %s256 = scalar_select %p255, %s254, 3
        %s257 = smul.addr %s256, 4
        %s258 = scalar_lea.vmem %s3, %s257
        %s259 = smul.u32 2, %s14
        %v261 = vld [vmem:[%s0] sm:$0xf]
        %v262 = vld [vmem:[%s232] sm:$0xff]
        %v263 = vld [vmem:[%s232 + $0x8] sm:$0xff]
        %v264 = vld [vmem:[%s232 + $0x10] sm:$0xff]
        %v265 = vld [vmem:[%s232 + $0x18] sm:$0xff]
        %v266 = vld [vmem:[%s232 + $0x20] sm:$0xff]
        %v267 = vld [vmem:[%s232 + $0x28] sm:$0xff]
        %v268 = vld [vmem:[%s232 + $0x30] sm:$0xff]
        %v269 = vld [vmem:[%s232 + $0x38] sm:$0xff]
        %v270 = vld [vmem:[%s232 + $0x40] sm:$0xff]
        %v271 = vld [vmem:[%s232 + $0x48] sm:$0xff]
        %v272 = vld [vmem:[%s232 + $0x50] sm:$0xff]
        %v273 = vld [vmem:[%s232 + $0x58] sm:$0xff]
        %v274 = vld [vmem:[%s232 + $0x60] sm:$0xff]
        %v275 = vld [vmem:[%s232 + $0x68] sm:$0x33]
        %v276 = vld [vmem:[%s2] sm:$0xff]
        %278 = vset.pattern.permute.xlu0 0
        %279 = vperm.xlu0 %278, %v276
        %v280 = vpop.permute.xlu0 %279
        %v296 = vunpack.c.l.b16 %v262
        %v297 = vunpack.c.h.b16 %v262
        %v298 = vunpack.c.l.b16 %v263
        %v299 = vunpack.c.h.b16 %v263
        %v300 = vunpack.c.l.b16 %v264
        %v301 = vunpack.c.h.b16 %v264
        %v302 = vunpack.c.l.b16 %v265
        %v303 = vunpack.c.h.b16 %v265
        %v304 = vunpack.c.l.b16 %v266
        %v305 = vunpack.c.h.b16 %v266
        %v306 = vunpack.c.l.b16 %v267
        %v307 = vunpack.c.h.b16 %v267
        %v308 = vunpack.c.l.b16 %v268
        %v309 = vunpack.c.h.b16 %v268
        %v310 = vunpack.c.l.b16 %v269
        %v311 = vunpack.c.h.b16 %v269
        %v312 = vunpack.c.l.b16 %v270
        %v313 = vunpack.c.h.b16 %v270
        %v314 = vunpack.c.l.b16 %v271
        %v315 = vunpack.c.h.b16 %v271
        %v316 = vunpack.c.l.b16 %v272
        %v317 = vunpack.c.h.b16 %v272
        %v318 = vunpack.c.l.b16 %v273
        %v319 = vunpack.c.h.b16 %v273
        %v320 = vunpack.c.l.b16 %v274
        %v321 = vunpack.c.h.b16 %v274
        %v322 = vunpack.c.l.b16 %v275
        %v323 = vunpack.c.h.b16 %v275
        %v324 = vpack.c.b16 %v298, %v296
        %v325 = vpack.c.b16 %v299, %v297
        %v326 = vpack.c.b16 %v302, %v300
        %v327 = vpack.c.b16 %v303, %v301
        %v328 = vpack.c.b16 %v306, %v304
        %v329 = vpack.c.b16 %v307, %v305
        %v330 = vpack.c.b16 %v310, %v308
        %v331 = vpack.c.b16 %v311, %v309
        %v332 = vpack.c.b16 %v314, %v312
        %v333 = vpack.c.b16 %v315, %v313
        %v334 = vpack.c.b16 %v318, %v316
        %v335 = vpack.c.b16 %v319, %v317
        %v336 = vpack.c.b16 %v322, %v320
        %v337 = vpack.c.b16 %v323, %v321
        %vm350 = vcmask 883712
        %v352 = vsel %vm350, %v261, 0
        %vm354 = vcmask 1045504
        %v356 = vsel %vm354, %v336, 0
        %v359 = vsel %vm354, %v337, 0
        %361 = vmatprep.subr.bf16.mxu0 %v325
        %362 = vmatpush1.bf16.msra.mxu0 %v324
        %363 = vmatprep.subr.bf16.mxu0 %v327
        %364 = vmatpush1.bf16.msra.mxu0 %v326
        %365 = vmatprep.subr.bf16.mxu0 %v329
        %366 = vmatpush1.bf16.msra.mxu0 %v328
        %367 = vmatprep.subr.bf16.mxu0 %v331
        %368 = vmatpush1.bf16.msra.mxu0 %v330
        %369 = vmatprep.subr.bf16.mxu0 %v333
        %370 = vmatpush1.bf16.msra.mxu0 %v332
        %371 = vmatprep.subr.bf16.mxu0 %v335
        %372 = vmatpush1.bf16.msra.mxu0 %v334
        %373 = vmatprep.subr.bf16.mxu0 %v359
        %374 = vmatpush1.bf16.msra.mxu0 %v356
        %375 = vmatprep.subr.bf16.mxu0 0
        %376 = vmatpush1.bf16.msra.mxu0 0
        %377 = vmatprep.subr.bf16.mxu0 0
        %378 = vmatpush1.bf16.msra.mxu0 0
        %379 = vmatprep.subr.bf16.mxu0 0
        %380 = vmatpush1.bf16.msra.mxu0 0
        %381 = vmatprep.subr.bf16.mxu0 0
        %382 = vmatpush1.bf16.msra.mxu0 0
        %383 = vmatprep.subr.bf16.mxu0 0
        %384 = vmatpush1.bf16.msra.mxu0 0
        %385 = vmatprep.subr.bf16.mxu0 0
        %386 = vmatpush1.bf16.msra.mxu0 0
        %387 = vmatprep.subr.bf16.mxu0 0
        %388 = vmatpush1.bf16.msra.mxu0 0
        %389 = vmatprep.subr.bf16.mxu0 0
        %390 = vmatpush1.bf16.msra.mxu0 0
        %391 = vmatprep.subr.bf16.mxu0 0
        %392 = vmatpush1.bf16.msra.mxu0 0
        %393 = vmatprep.mubr.bf16.mxu0 0
        %394 = vmatmul.mubr.bf16.gmra.mrb[0].mxu0 %v352
        %v395 = vpop.f32.mrb[0].mxu0
        %v396 = vadd.f32 %v280, %v395
        %v397 = vpop.f32.mrb[0].mxu0
        %v398 = vadd.f32 %v280, %v397
        %v399 = vpop.f32.mrb[0].mxu0
        %v400 = vpop.f32.mrb[0].mxu0
        %401 = vdwg.mxu0
        %v402 = vmin.f32 %v396, 20.0
        %v403 = vmin.f32 %v398, 20.0
        %v404 = vmul.f32 %v402, 1.442695
        %v405 = vpow.pop %v404
        %v406 = vmul.f32 %v403, 1.442695
        %v407 = vpow.pop %v406
        %v408 = vadd.f32 %v405, 1.0
        %v409 = vadd.f32 %v407, 1.0
        %v410 = vmul.f32 %v408, %v408
        %v411 = vmul.f32 %v409, %v409
        %v412 = vadd.f32 %v410, 1.0
        %v413 = vadd.f32 %v411, 1.0
        %v414 = vrcp.pop %v412
        %v415 = vrcp.pop %v413
        %v416 = vmul.f32 %v414, 2.0
        %v417 = vmul.f32 %v415, 2.0
        %v418 = vsub.f32 1.0, %v416
        %v419 = vsub.f32 1.0, %v417
        %v420 = vmul.f32 %v396, %v418
        %v421 = vmul.f32 %v398, %v419
        %v422 = vpack.c.bf16 %v420, %v420
        %v423 = vpack.c.bf16 %v421, %v421
        %v426 = vunpack.c.l.b16 %v422
        %v427 = vunpack.c.l.b16 %v423
        %v428 = vpack.c.b16 %v427, %v426
        %430 = vst [vmem:[%s258] sm:$0xff] %v428
        %s431 = smul.u32 2, %s14
        %p432 = scmp.lt.s32.totalorder %s431, 3
        %s433 = scalar_select %p432, %s431, 3
        %s434 = smul.addr %s433, 4
        %s435 = scalar_lea.vmem %s3, %s434
        // Predicated region
        $region71: #{hourglass_forward.6} parent=65 // pred_check
          %p436 = pneg %p100
        $region72: #{hourglass_forward.6} parent=65 // pred_check_branch
          %438 = sbr.rel (%p436) target = $region74
        $region73: #{hourglass_forward.6} parent=65 // pred_region
          %s439 = smul.u32 2, %s14
        $region74: #{hourglass_forward.6} parent=65 // pred_fallthru
          _
      $region66: #{hourglass_forward.6} parent=5 // pred_fallthru
        _
      %p440 = scmp.le.s32.totalorder 2, %s9
      // Predicated region
      $region75: #{hourglass_forward.6} parent=5 // pred_check
        %p441 = pneg %p440
      $region76: #{hourglass_forward.6} parent=5 // pred_check_branch
        %443 = sbr.rel (%p441) target = $region78
      $region77: #{hourglass_forward.6} parent=5 // pred_region
        %s444 = ssub.s32 %s9, 2
        // Predicated region
        $region79: #{hourglass_forward.6} parent=77 // pred_check
          %p445 = pneg %p106
        $region80: #{hourglass_forward.6} parent=77 // pred_check_branch
          %447 = sbr.rel (%p445) target = $region82
        $region81: #{hourglass_forward.6} parent=77 // pred_region
          %s448 = smul.u32 2, %s15
          %p449 = scmp.lt.s32.totalorder %s448, 3
          %s450 = scalar_select %p449, %s448, 3
          %s451 = smul.addr %s450, 4
          %s452 = scalar_lea.vmem %s3, %s451
        $region82: #{hourglass_forward.6} parent=77 // pred_fallthru
          _
      $region78: #{hourglass_forward.6} parent=5 // pred_fallthru
        _
    $region6: #{hourglass_forward.6} parent=1 // loop_footer
      %s13 = sadd.s32 1, %s9
    $region7: #{hourglass_forward.6} parent=1 // loop_footer_branch
      %8 = sbr.rel target = $region3
    $region8: #{hourglass_forward.6} parent=1 // loop_exit
      _

// kernel: hourglass_forward.7
$region0: #{hourglass_forward.7}
  #allocation0 [shape = 'u32[]', space=smem, size = 0x4, offset = 0x4, fixed_abs, tag = 'smem constant byte address 0x4 - core index']
  #allocation1 [shape = 'u32[144,128]{1,0:T(1,128)}', space=vmem, size = 0x12000, scoped, tag = 'internal scratch']
  %s0 = inlined_call_operand.vmem [shape: bf16[8,216], index: 0, kind: input, shape index: {}]
  %s1 = inlined_call_operand.vmem [shape: bf16[216,512], index: 1, kind: input, shape index: {}]
  %s2 = inlined_call_operand.vmem [shape: f32[8,1], index: 2, kind: input, shape index: {}]
  %s3 = inlined_call_operand.vmem [shape: bf16[8,512], index: 3, kind: output, shape index: {}]
  %s4 = sld [smem:[#allocation0]]
  $region83: #{hourglass_forward.7} parent=0
    _
  %s6 = ssub.s32 1, %s4
  %s7 = scalar_select 0, %s6, %s4
  $region1: #{hourglass_forward.7} parent=0
    #allocation2 [shape = 'u8[221184]{0}', space=vmem, size = 0x36000, scoped, tag = 'input window, operand 1']
    loop: start=0, step=1, limit=4
    $region2: #{hourglass_forward.7} parent=1 // loop_pre_header
      _
    $region3: #{hourglass_forward.7} parent=1 // loop_header
      %s9 = sphi 0, %s13
      %p10 = scmp.ge.s32.totalorder %s9, 4
      %s17 = sphi 0, %s17
      %s19 = sphi 0, %s17
      %s20 = sphi 0, %s19
      %s34 = sphi 0, %s20
      %s40 = sphi 0, %s42
      %s43 = sphi 0, %s40
      %s44 = sphi 0, %s43
      %s60 = sphi 0, %s44
      %s64 = sphi 0, %s64
      %s66 = sphi 0, %s64
      %s67 = sphi 0, %s66
      %s81 = sphi 0, %s67
      %s87 = sphi 0, %s89
      %s90 = sphi 0, %s87
      %s91 = sphi 0, %s90
      %s107 = sphi 0, %s91
    $region4: #{hourglass_forward.7} parent=1 // loop_header_branch
      %12 = sbr.rel (%p10) target = $region8
    $region5: #{hourglass_forward.7} parent=1 // loop_body
      %s14 = ssub.s32 %s9, 1
      %s15 = ssub.s32 %s9, 2
      %s16 = sadd.s32 %s9, 1
      %s18 = sadd.s32 %s17, 1
      %p21 = scmp.eq.s32.totalorder %s9, 1
      %p22 = scmp.ne.s32.totalorder %s17, %s19
      %p23 = scmp.eq.s32.totalorder %s9, 0
      %p24 = por %p22, %p23
      %p25 = scmp.ne.s32.totalorder %s17, %s19
      %p26 = scmp.eq.s32.totalorder %s14, 1
      %p27 = por %p25, %p26
      %p28 = scmp.ne.s32.totalorder %s19, %s20
      %p29 = scmp.eq.s32.totalorder %s14, 0
      %p30 = por %p28, %p29
      %p31 = scmp.ne.s32.totalorder %s19, %s20
      %p32 = scmp.eq.s32.totalorder %s15, 1
      %p33 = por %p31, %p32
      %p35 = scmp.ne.s32.totalorder %s20, %s34
      %p36 = scmp.eq.s32.totalorder %s15, 0
      %p37 = por %p35, %p36
      %s38 = ssub.s32 %s9, %s16
      %p39 = scmp.eq.s32.totalorder %s38, 0
      %s41 = sadd.s32 %s40, 1
      %s42 = scalar_select %p39, %s40, %s41
      %p45 = pneg %p39
      %p46 = scmp.eq.s32.totalorder %s9, 1
      %p47 = por %p45, %p46
      %p48 = scmp.ne.s32.totalorder %s40, %s43
      %p49 = scmp.eq.s32.totalorder %s9, 0
      %p50 = por %p48, %p49
      %p51 = scmp.ne.s32.totalorder %s40, %s43
      %p52 = scmp.eq.s32.totalorder %s14, 1
      %p53 = por %p51, %p52
      %p54 = scmp.ne.s32.totalorder %s43, %s44
      %p55 = scmp.eq.s32.totalorder %s14, 0
      %p56 = por %p54, %p55
      %p57 = scmp.ne.s32.totalorder %s43, %s44
      %p58 = scmp.eq.s32.totalorder %s15, 1
      %p59 = por %p57, %p58
      %p61 = scmp.ne.s32.totalorder %s44, %s60
      %p62 = scmp.eq.s32.totalorder %s15, 0
      %p63 = por %p61, %p62
      %s65 = sadd.s32 %s64, 1
      %p68 = scmp.eq.s32.totalorder %s9, 1
      %p69 = scmp.ne.s32.totalorder %s64, %s66
      %p70 = scmp.eq.s32.totalorder %s9, 0
      %p71 = por %p69, %p70
      %p72 = scmp.ne.s32.totalorder %s64, %s66
      %p73 = scmp.eq.s32.totalorder %s14, 1
      %p74 = por %p72, %p73
      %p75 = scmp.ne.s32.totalorder %s66, %s67
      %p76 = scmp.eq.s32.totalorder %s14, 0
      %p77 = por %p75, %p76
      %p78 = scmp.ne.s32.totalorder %s66, %s67
      %p79 = scmp.eq.s32.totalorder %s15, 1
      %p80 = por %p78, %p79
      %p82 = scmp.ne.s32.totalorder %s67, %s81
      %p83 = scmp.eq.s32.totalorder %s15, 0
      %p84 = por %p82, %p83
      %s85 = ssub.s32 %s9, %s16
      %p86 = scmp.eq.s32.totalorder %s85, 0
      %s88 = sadd.s32 %s87, 1
      %s89 = scalar_select %p86, %s87, %s88
      %p92 = pneg %p86
      %p93 = scmp.eq.s32.totalorder %s9, 1
      %p94 = por %p92, %p93
      %p95 = scmp.ne.s32.totalorder %s87, %s90
      %p96 = scmp.eq.s32.totalorder %s9, 0
      %p97 = por %p95, %p96
      %p98 = scmp.ne.s32.totalorder %s87, %s90
      %p99 = scmp.eq.s32.totalorder %s14, 1
      %p100 = por %p98, %p99
      %p101 = scmp.ne.s32.totalorder %s90, %s91
      %p102 = scmp.eq.s32.totalorder %s14, 0
      %p103 = por %p101, %p102
      %p104 = scmp.ne.s32.totalorder %s90, %s91
      %p105 = scmp.eq.s32.totalorder %s15, 1
      %p106 = por %p104, %p105
      %p108 = scmp.ne.s32.totalorder %s91, %s107
      %p109 = scmp.eq.s32.totalorder %s15, 0
      %p110 = por %p108, %p109
      %p111 = scmp.le.s32.totalorder 1, %s9
      %p112 = scmp.lt.s32.totalorder %s9, 3
      %p113 = pnand %p111, %p112
      %p114 = pneg %p113
      // Predicated region
      $region9: #{hourglass_forward.7} parent=5 // pred_check
        _
      $region10: #{hourglass_forward.7} parent=5 // pred_check_branch
        %116 = sbr.rel (%p113) target = $region12
      $region11: #{hourglass_forward.7} parent=5 // pred_region
        %s117 = ssub.s32 %s9, 1
        // Predicated region
        $region13: #{hourglass_forward.7} parent=11 // pred_check
          %p118 = pneg %p30
        $region14: #{hourglass_forward.7} parent=11 // pred_check_branch
          %120 = sbr.rel (%p118) target = $region16
        $region15: #{hourglass_forward.7} parent=11 // pred_region
          _
        $region16: #{hourglass_forward.7} parent=11 // pred_fallthru
          _
        // Predicated region
        $region17: #{hourglass_forward.7} parent=11 // pred_check
          %p121 = pneg %p77
        $region18: #{hourglass_forward.7} parent=11 // pred_check_branch
          %123 = sbr.rel (%p121) target = $region20
        $region19: #{hourglass_forward.7} parent=11 // pred_region
          _
        $region20: #{hourglass_forward.7} parent=11 // pred_fallthru
          _
      $region12: #{hourglass_forward.7} parent=5 // pred_fallthru
        _
      %p124 = scmp.lt.s32.totalorder %s9, 2
      // Predicated region
      $region21: #{hourglass_forward.7} parent=5 // pred_check
        %p125 = pneg %p124
      $region22: #{hourglass_forward.7} parent=5 // pred_check_branch
        %127 = sbr.rel (%p125) target = $region24
      $region23: #{hourglass_forward.7} parent=5 // pred_region
        // Predicated region
        $region25: #{hourglass_forward.7} parent=23 // pred_check
          %p128 = pneg %p50
        $region26: #{hourglass_forward.7} parent=23 // pred_check_branch
          %130 = sbr.rel (%p128) target = $region28
        $region27: #{hourglass_forward.7} parent=23 // pred_region
          %s131 = sand.u32 %s40, 1
          %s132 = sand.u32 %s40, 1
          %s133 = smul.addr %s132, 216
          %s134 = scalar_lea.vmem [#allocation2], %s133
          %s135 = smul.u32 2, %s9
          %s136 = smul.addr %s135, 4
          %s137 = scalar_lea.vmem %s1, %s136
          // Predicated region
          $region29: #{hourglass_forward.7} parent=27 // pred_check
            _
          $region30: #{hourglass_forward.7} parent=27 // pred_check_branch
            %139 = sbr.rel (0) target = $region32
          $region31: #{hourglass_forward.7} parent=27 // pred_region
            // Predicated region
            $region33: #{hourglass_forward.7} parent=31 // pred_check
              _
            $region34: #{hourglass_forward.7} parent=31 // pred_check_branch
              %141 = sbr.rel (0) target = $region36
            $region35: #{hourglass_forward.7} parent=31 // pred_region
              // Predicated region
              $region48: #{hourglass_forward.7} parent=35 // pred_check
                _
              $region49: #{hourglass_forward.7} parent=35 // pred_check_branch
                %208 = sbr.rel (0) target = $region51
              $region50: #{hourglass_forward.7} parent=35 // pred_region
                loop: start=0, step=1, limit=1
                $region52: #{hourglass_forward.7} parent=50 // loop_pre_header
                  _
                $region53: #{hourglass_forward.7} parent=50 // loop_header
                  %s210 = sphi 0, %s214
                  %p211 = scmp.ge.s32.totalorder %s210, 1
                  %s215 = sphi %s137, %s137
                  %s216 = sphi %s134, %s134
                $region54: #{hourglass_forward.7} parent=50 // loop_header_branch
                  %213 = sbr.rel (%p211) target = $region58
                $region55: #{hourglass_forward.7} parent=50 // loop_body
                  %v217 = vld [vmem:[%s215] sm:$0xff]
                  %218 = vst [vmem:[%s216] sm:$0xff] %v217
                  %v219 = vld [vmem:[%s215 + $0x10] sm:$0xff]
                  %220 = vst [vmem:[%s216 + $0x8] sm:$0xff] %v219
                  %v221 = vld [vmem:[%s215 + $0x20] sm:$0xff]
                  %222 = vst [vmem:[%s216 + $0x10] sm:$0xff] %v221
                  %v223 = vld [vmem:[%s215 + $0x30] sm:$0xff]
                  %224 = vst [vmem:[%s216 + $0x18] sm:$0xff] %v223
                  %v225 = vld [vmem:[%s215 + $0x40] sm:$0xff]
                  %226 = vst [vmem:[%s216 + $0x20] sm:$0xff] %v225
                  %v227 = vld [vmem:[%s215 + $0x50] sm:$0xff]
                  %228 = vst [vmem:[%s216 + $0x28] sm:$0xff] %v227
                  %v229 = vld [vmem:[%s215 + $0x60] sm:$0xff]
                  %230 = vst [vmem:[%s216 + $0x30] sm:$0xff] %v229
                  %v231 = vld [vmem:[%s215 + $0x70] sm:$0xff]
                  %232 = vst [vmem:[%s216 + $0x38] sm:$0xff] %v231
                  %v233 = vld [vmem:[%s215 + $0x80] sm:$0xff]
                  %234 = vst [vmem:[%s216 + $0x40] sm:$0xff] %v233
                  %v235 = vld [vmem:[%s215 + $0x90] sm:$0xff]
                  %236 = vst [vmem:[%s216 + $0x48] sm:$0xff] %v235
                  %v237 = vld [vmem:[%s215 + $0xa0] sm:$0xff]
                  %238 = vst [vmem:[%s216 + $0x50] sm:$0xff] %v237
                  %v239 = vld [vmem:[%s215 + $0xb0] sm:$0xff]
                  %240 = vst [vmem:[%s216 + $0x58] sm:$0xff] %v239
                  %v241 = vld [vmem:[%s215 + $0xc0] sm:$0xff]
                  %242 = vst [vmem:[%s216 + $0x60] sm:$0xff] %v241
                  %v243 = vld [vmem:[%s215 + $0xd0] sm:$0xff]
                  %244 = vst [vmem:[%s216 + $0x68] sm:$0xff] %v243
                  %v245 = vld [vmem:[%s215 + $0xe0] sm:$0xff]
                  %246 = vst [vmem:[%s216 + $0x70] sm:$0xff] %v245
                  %v247 = vld [vmem:[%s215 + $0xf0] sm:$0xff]
                  %248 = vst [vmem:[%s216 + $0x78] sm:$0xff] %v247
                  %v249 = vld [vmem:[%s215 + $0x100] sm:$0xff]
                  %250 = vst [vmem:[%s216 + $0x80] sm:$0xff] %v249
                  %v251 = vld [vmem:[%s215 + $0x110] sm:$0xff]
                  %252 = vst [vmem:[%s216 + $0x88] sm:$0xff] %v251
                  %v253 = vld [vmem:[%s215 + $0x120] sm:$0xff]
                  %254 = vst [vmem:[%s216 + $0x90] sm:$0xff] %v253
                  %v255 = vld [vmem:[%s215 + $0x130] sm:$0xff]
                  %256 = vst [vmem:[%s216 + $0x98] sm:$0xff] %v255
                  %v257 = vld [vmem:[%s215 + $0x140] sm:$0xff]
                  %258 = vst [vmem:[%s216 + $0xa0] sm:$0xff] %v257
                  %v259 = vld [vmem:[%s215 + $0x150] sm:$0xff]
                  %260 = vst [vmem:[%s216 + $0xa8] sm:$0xff] %v259
                  %v261 = vld [vmem:[%s215 + $0x160] sm:$0xff]
                  %262 = vst [vmem:[%s216 + $0xb0] sm:$0xff] %v261
                  %v263 = vld [vmem:[%s215 + $0x170] sm:$0xff]
                  %264 = vst [vmem:[%s216 + $0xb8] sm:$0xff] %v263
                  %v265 = vld [vmem:[%s215 + $0x180] sm:$0xff]
                  %266 = vst [vmem:[%s216 + $0xc0] sm:$0xff] %v265
                  %v267 = vld [vmem:[%s215 + $0x190] sm:$0xff]
                  %268 = vst [vmem:[%s216 + $0xc8] sm:$0xff] %v267
                  %v269 = vld [vmem:[%s215 + $0x1a0] sm:$0xff]
                  %270 = vst [vmem:[%s216 + $0xd0] sm:$0xff] %v269
                $region56: #{hourglass_forward.7} parent=50 // loop_footer
                  %s214 = sadd.s32 1, %s210
                $region57: #{hourglass_forward.7} parent=50 // loop_footer_branch
                  %209 = sbr.rel target = $region53
                $region58: #{hourglass_forward.7} parent=50 // loop_exit
                  _
              $region51: #{hourglass_forward.7} parent=35 // pred_fallthru
                _
              // Predicated region
              $region59: #{hourglass_forward.7} parent=35 // pred_check
                _
              $region60: #{hourglass_forward.7} parent=35 // pred_check_branch
                %272 = sbr.rel target = $region62
              $region61: #{hourglass_forward.7} parent=35 // pred_region
                _
              $region62: #{hourglass_forward.7} parent=35 // pred_fallthru
                _
            $region36: #{hourglass_forward.7} parent=31 // pred_fallthru
              _
            // Predicated region
            $region37: #{hourglass_forward.7} parent=31 // pred_check
              _
            $region38: #{hourglass_forward.7} parent=31 // pred_check_branch
              %143 = sbr.rel target = $region40
            $region39: #{hourglass_forward.7} parent=31 // pred_region
              loop: start=0, step=1, limit=1
              $region41: #{hourglass_forward.7} parent=39 // loop_pre_header
                _
              $region42: #{hourglass_forward.7} parent=39 // loop_header
                %s146 = sphi 0, %s150
                %p147 = scmp.ge.s32.totalorder %s146, 1
                %s151 = sphi %s137, %s137
                %s152 = sphi %s134, %s134
              $region43: #{hourglass_forward.7} parent=39 // loop_header_branch
                %149 = sbr.rel (%p147) target = $region47
              $region44: #{hourglass_forward.7} parent=39 // loop_body
                %v153 = vld [vmem:[%s151] sm:$0xff]
                %154 = vst [vmem:[%s152] sm:$0xff] %v153
                %v155 = vld [vmem:[%s151 + $0x10] sm:$0xff]
                %156 = vst [vmem:[%s152 + $0x8] sm:$0xff] %v155
                %v157 = vld [vmem:[%s151 + $0x20] sm:$0xff]
                %158 = vst [vmem:[%s152 + $0x10] sm:$0xff] %v157
                %v159 = vld [vmem:[%s151 + $0x30] sm:$0xff]
                %160 = vst [vmem:[%s152 + $0x18] sm:$0xff] %v159
                %v161 = vld [vmem:[%s151 + $0x40] sm:$0xff]
                %162 = vst [vmem:[%s152 + $0x20] sm:$0xff] %v161
                %v163 = vld [vmem:[%s151 + $0x50] sm:$0xff]
                %164 = vst [vmem:[%s152 + $0x28] sm:$0xff] %v163
                %v165 = vld [vmem:[%s151 + $0x60] sm:$0xff]
                %166 = vst [vmem:[%s152 + $0x30] sm:$0xff] %v165
                %v167 = vld [vmem:[%s151 + $0x70] sm:$0xff]
                %168 = vst [vmem:[%s152 + $0x38] sm:$0xff] %v167
                %v169 = vld [vmem:[%s151 + $0x80] sm:$0xff]
                %170 = vst [vmem:[%s152 + $0x40] sm:$0xff] %v169
                %v171 = vld [vmem:[%s151 + $0x90] sm:$0xff]
                %172 = vst [vmem:[%s152 + $0x48] sm:$0xff] %v171
                %v173 = vld [vmem:[%s151 + $0xa0] sm:$0xff]
                %174 = vst [vmem:[%s152 + $0x50] sm:$0xff] %v173
                %v175 = vld [vmem:[%s151 + $0xb0] sm:$0xff]
                %176 = vst [vmem:[%s152 + $0x58] sm:$0xff] %v175
                %v177 = vld [vmem:[%s151 + $0xc0] sm:$0xff]
                %178 = vst [vmem:[%s152 + $0x60] sm:$0xff] %v177
                %v179 = vld [vmem:[%s151 + $0xd0] sm:$0xff]
                %180 = vst [vmem:[%s152 + $0x68] sm:$0xff] %v179
                %v181 = vld [vmem:[%s151 + $0xe0] sm:$0xff]
                %182 = vst [vmem:[%s152 + $0x70] sm:$0xff] %v181
                %v183 = vld [vmem:[%s151 + $0xf0] sm:$0xff]
                %184 = vst [vmem:[%s152 + $0x78] sm:$0xff] %v183
                %v185 = vld [vmem:[%s151 + $0x100] sm:$0xff]
                %186 = vst [vmem:[%s152 + $0x80] sm:$0xff] %v185
                %v187 = vld [vmem:[%s151 + $0x110] sm:$0xff]
                %188 = vst [vmem:[%s152 + $0x88] sm:$0xff] %v187
                %v189 = vld [vmem:[%s151 + $0x120] sm:$0xff]
                %190 = vst [vmem:[%s152 + $0x90] sm:$0xff] %v189
                %v191 = vld [vmem:[%s151 + $0x130] sm:$0xff]
                %192 = vst [vmem:[%s152 + $0x98] sm:$0xff] %v191
                %v193 = vld [vmem:[%s151 + $0x140] sm:$0xff]
                %194 = vst [vmem:[%s152 + $0xa0] sm:$0xff] %v193
                %v195 = vld [vmem:[%s151 + $0x150] sm:$0xff]
                %196 = vst [vmem:[%s152 + $0xa8] sm:$0xff] %v195
                %v197 = vld [vmem:[%s151 + $0x160] sm:$0xff]
                %198 = vst [vmem:[%s152 + $0xb0] sm:$0xff] %v197
                %v199 = vld [vmem:[%s151 + $0x170] sm:$0xff]
                %200 = vst [vmem:[%s152 + $0xb8] sm:$0xff] %v199
                %v201 = vld [vmem:[%s151 + $0x180] sm:$0xff]
                %202 = vst [vmem:[%s152 + $0xc0] sm:$0xff] %v201
                %v203 = vld [vmem:[%s151 + $0x190] sm:$0xff]
                %204 = vst [vmem:[%s152 + $0xc8] sm:$0xff] %v203
                %v205 = vld [vmem:[%s151 + $0x1a0] sm:$0xff]
                %206 = vst [vmem:[%s152 + $0xd0] sm:$0xff] %v205
              $region45: #{hourglass_forward.7} parent=39 // loop_footer
                %s150 = sadd.s32 1, %s146
              $region46: #{hourglass_forward.7} parent=39 // loop_footer_branch
                %145 = sbr.rel target = $region42
              $region47: #{hourglass_forward.7} parent=39 // loop_exit
                _
            $region40: #{hourglass_forward.7} parent=31 // pred_fallthru
              _
          $region32: #{hourglass_forward.7} parent=27 // pred_fallthru
            _
          %273 = vnop
        $region28: #{hourglass_forward.7} parent=23 // pred_fallthru
          _
      $region24: #{hourglass_forward.7} parent=5 // pred_fallthru
        _
      %p274 = scmp.le.s32.totalorder 1, %s9
      %p275 = scmp.lt.s32.totalorder %s9, 3
      %p276 = pnand %p274, %p275
      %p277 = pneg %p276
      // Predicated region
      $region63: #{hourglass_forward.7} parent=5 // pred_check
        _
      $region64: #{hourglass_forward.7} parent=5 // pred_check_branch
        %279 = sbr.rel (%p276) target = $region66
      $region65: #{hourglass_forward.7} parent=5 // pred_region
        %s280 = ssub.s32 %s9, 1
        %s281 = sand.u32 %s43, 1
        %s282 = sand.u32 %s43, 1
        %s283 = smul.addr %s282, 216
        %s284 = scalar_lea.vmem [#allocation2], %s283
        // Predicated region
        $region67: #{hourglass_forward.7} parent=65 // pred_check
          %p285 = pneg %p56
        $region68: #{hourglass_forward.7} parent=65 // pred_check_branch
          %287 = sbr.rel (%p285) target = $region70
        $region69: #{hourglass_forward.7} parent=65 // pred_region
          _
        $region70: #{hourglass_forward.7} parent=65 // pred_fallthru
          _
        %p288 = pneg %p30
        %p289 = pneg %p27
        %s290 = sand.u32 %s43, 1
        %s291 = sand.u32 %s43, 1
        %s292 = smul.addr %s291, 216
        %s293 = scalar_lea.vmem [#allocation2], %s292
        %p294 = pneg %p56
        %p295 = pneg %p53
        %p296 = pneg %p77
        %p297 = pneg %p74
        %p298 = pneg %p103
        %p299 = pneg %p100
        %s300 = smul.u32 2, %s14
        %p301 = scmp.lt.s32.totalorder %s300, 3
        %s302 = scalar_select %p301, %s300, 3
        %s303 = smul.addr %s302, 4
        %s304 = scalar_lea.vmem %s3, %s303
        %s305 = smul.u32 2, %s14
        %s306 = smul.u32 2, %s14
        %p307 = scmp.lt.s32.totalorder %s306, 3
        %s308 = scalar_select %p307, %s306, 3
        %s309 = smul.addr %s308, 4
        %s310 = scalar_lea.vmem %s3, %s309
        %s311 = smul.u32 2, %s14
        %v313 = vld [vmem:[%s0] sm:$0xff]
        %v314 = vld [vmem:[%s284] sm:$0xff]
        %v315 = vld [vmem:[%s284 + $0x8] sm:$0xff]
        %v316 = vld [vmem:[%s284 + $0x10] sm:$0xff]
        %v317 = vld [vmem:[%s284 + $0x18] sm:$0xff]
        %v318 = vld [vmem:[%s284 + $0x20] sm:$0xff]
        %v319 = vld [vmem:[%s284 + $0x28] sm:$0xff]
        %v320 = vld [vmem:[%s284 + $0x30] sm:$0xff]
        %v321 = vld [vmem:[%s284 + $0x38] sm:$0xff]
        %v322 = vld [vmem:[%s284 + $0x40] sm:$0xff]
        %v323 = vld [vmem:[%s284 + $0x48] sm:$0xff]
        %v324 = vld [vmem:[%s284 + $0x50] sm:$0xff]
        %v325 = vld [vmem:[%s284 + $0x58] sm:$0xff]
        %v326 = vld [vmem:[%s284 + $0x60] sm:$0xff]
        %v327 = vld [vmem:[%s284 + $0x68] sm:$0xff]
        %v328 = vld [vmem:[%s284 + $0x70] sm:$0xff]
        %v329 = vld [vmem:[%s284 + $0x78] sm:$0xff]
        %v330 = vld [vmem:[%s284 + $0x80] sm:$0xff]
        %v331 = vld [vmem:[%s284 + $0x88] sm:$0xff]
        %v332 = vld [vmem:[%s284 + $0x90] sm:$0xff]
        %v333 = vld [vmem:[%s284 + $0x98] sm:$0xff]
        %v334 = vld [vmem:[%s284 + $0xa0] sm:$0xff]
        %v335 = vld [vmem:[%s284 + $0xa8] sm:$0xff]
        %v336 = vld [vmem:[%s284 + $0xb0] sm:$0xff]
        %v337 = vld [vmem:[%s284 + $0xb8] sm:$0xff]
        %v338 = vld [vmem:[%s284 + $0xc0] sm:$0xff]
        %v339 = vld [vmem:[%s284 + $0xc8] sm:$0xff]
        %v340 = vld [vmem:[%s284 + $0xd0] sm:$0xff]
        %v341 = vld [vmem:[%s2] sm:$0xff]
        %343 = vset.pattern.permute.xlu0 0
        %344 = vperm.xlu0 %343, %v341
        %v345 = vpop.permute.xlu0 %344
        %v348 = vunpack.c.l.b16 %v313
        %v349 = vunpack.c.h.b16 %v313
        %v350 = vpack.c.b16 %v348, %v348
        %v351 = vpack.c.b16 %v349, %v349
        %v380 = vunpack.c.l.b16 %v314
        %v381 = vunpack.c.h.b16 %v314
        %v382 = vunpack.c.l.b16 %v315
        %v383 = vunpack.c.h.b16 %v315
        %v384 = vunpack.c.l.b16 %v316
        %v385 = vunpack.c.h.b16 %v316
        %v386 = vunpack.c.l.b16 %v317
        %v387 = vunpack.c.h.b16 %v317
        %v388 = vunpack.c.l.b16 %v318
        %v389 = vunpack.c.h.b16 %v318
        %v390 = vunpack.c.l.b16 %v319
        %v391 = vunpack.c.h.b16 %v319
        %v392 = vunpack.c.l.b16 %v320
        %v393 = vunpack.c.h.b16 %v320
        %v394 = vunpack.c.l.b16 %v321
        %v395 = vunpack.c.h.b16 %v321
        %v396 = vunpack.c.l.b16 %v322
        %v397 = vunpack.c.h.b16 %v322
        %v398 = vunpack.c.l.b16 %v323
        %v399 = vunpack.c.h.b16 %v323
        %v400 = vunpack.c.l.b16 %v324
        %v401 = vunpack.c.h.b16 %v324
        %v402 = vunpack.c.l.b16 %v325
        %v403 = vunpack.c.h.b16 %v325
        %v404 = vunpack.c.l.b16 %v326
        %v405 = vunpack.c.h.b16 %v326
        %v406 = vunpack.c.l.b16 %v327
        %v407 = vunpack.c.h.b16 %v327
        %v408 = vunpack.c.l.b16 %v328
        %v409 = vunpack.c.h.b16 %v328
        %v410 = vunpack.c.l.b16 %v329
        %v411 = vunpack.c.h.b16 %v329
        %v412 = vunpack.c.l.b16 %v330
        %v413 = vunpack.c.h.b16 %v330
        %v414 = vunpack.c.l.b16 %v331
        %v415 = vunpack.c.h.b16 %v331
        %v416 = vunpack.c.l.b16 %v332
        %v417 = vunpack.c.h.b16 %v332
        %v418 = vunpack.c.l.b16 %v333
        %v419 = vunpack.c.h.b16 %v333
        %v420 = vunpack.c.l.b16 %v334
        %v421 = vunpack.c.h.b16 %v334
        %v422 = vunpack.c.l.b16 %v335
        %v423 = vunpack.c.h.b16 %v335
        %v424 = vunpack.c.l.b16 %v336
        %v425 = vunpack.c.h.b16 %v336
        %v426 = vunpack.c.l.b16 %v337
        %v427 = vunpack.c.h.b16 %v337
        %v428 = vunpack.c.l.b16 %v338
        %v429 = vunpack.c.h.b16 %v338
        %v430 = vunpack.c.l.b16 %v339
        %v431 = vunpack.c.h.b16 %v339
        %v432 = vunpack.c.l.b16 %v340
        %v433 = vunpack.c.h.b16 %v340
        %v434 = vpack.c.b16 %v382, %v380
        %v435 = vpack.c.b16 %v383, %v381
        %v436 = vpack.c.b16 %v386, %v384
        %v437 = vpack.c.b16 %v387, %v385
        %v438 = vpack.c.b16 %v390, %v388
        %v439 = vpack.c.b16 %v391, %v389
        %v440 = vpack.c.b16 %v394, %v392
        %v441 = vpack.c.b16 %v395, %v393
        %v442 = vpack.c.b16 %v398, %v396
        %v443 = vpack.c.b16 %v399, %v397
        %v444 = vpack.c.b16 %v402, %v400
        %v445 = vpack.c.b16 %v403, %v401
        %v446 = vpack.c.b16 %v406, %v404
        %v447 = vpack.c.b16 %v407, %v405
        %v448 = vpack.c.b16 %v410, %v408
        %v449 = vpack.c.b16 %v411, %v409
        %v450 = vpack.c.b16 %v414, %v412
        %v451 = vpack.c.b16 %v415, %v413
        %v452 = vpack.c.b16 %v418, %v416
        %v453 = vpack.c.b16 %v419, %v417
        %v454 = vpack.c.b16 %v422, %v420
        %v455 = vpack.c.b16 %v423, %v421
        %v456 = vpack.c.b16 %v426, %v424
        %v457 = vpack.c.b16 %v427, %v425
        %v458 = vpack.c.b16 %v430, %v428
        %v459 = vpack.c.b16 %v431, %v429
        %v460 = vpack.c.b16 %v432, %v432
        %v461 = vpack.c.b16 %v433, %v433
        %vm488 = vcmask 719872
        %v490 = vsel %vm488, %v351, 0
        %vm492 = vcmask 1043456
        %v494 = vsel %vm492, %v460, 0
        %v497 = vsel %vm492, %v461, 0
        %499 = vmatprep.subr.bf16.mxu0 %v435
        %500 = vmatpush1.bf16.msra.mxu0 %v434
        %501 = vmatprep.subr.bf16.mxu0 %v437
        %502 = vmatpush1.bf16.msra.mxu0 %v436
        %503 = vmatprep.subr.bf16.mxu0 %v439
        %504 = vmatpush1.bf16.msra.mxu0 %v438
        %505 = vmatprep.subr.bf16.mxu0 %v441
        %506 = vmatpush1.bf16.msra.mxu0 %v440
        %507 = vmatprep.subr.bf16.mxu0 %v443
        %508 = vmatpush1.bf16.msra.mxu0 %v442
        %509 = vmatprep.subr.bf16.mxu0 %v445
        %510 = vmatpush1.bf16.msra.mxu0 %v444
        %511 = vmatprep.subr.bf16.mxu0 %v447
        %512 = vmatpush1.bf16.msra.mxu0 %v446
        %513 = vmatprep.subr.bf16.mxu0 %v449
        %514 = vmatpush1.bf16.msra.mxu0 %v448
        %515 = vmatprep.subr.bf16.mxu0 %v451
        %516 = vmatpush1.bf16.msra.mxu0 %v450
        %517 = vmatprep.subr.bf16.mxu0 %v453
        %518 = vmatpush1.bf16.msra.mxu0 %v452
        %519 = vmatprep.subr.bf16.mxu0 %v455
        %520 = vmatpush1.bf16.msra.mxu0 %v454
        %521 = vmatprep.subr.bf16.mxu0 %v457
        %522 = vmatpush1.bf16.msra.mxu0 %v456
        %523 = vmatprep.subr.bf16.mxu0 %v459
        %524 = vmatpush1.bf16.msra.mxu0 %v458
        %525 = vmatprep.subr.bf16.mxu0 %v497
        %526 = vmatpush1.bf16.msra.mxu0 %v494
        %527 = vmatprep.subr.bf16.mxu0 0
        %528 = vmatpush1.bf16.msra.mxu0 0
        %529 = vmatprep.subr.bf16.mxu0 0
        %530 = vmatpush1.bf16.msra.mxu0 0
        %531 = vmatprep.mubr.bf16.mxu0 %v490
        %532 = vmatmul.mubr.bf16.gmra.mrb[0].mxu0 %v350
        %v533 = vpop.f32.mrb[0].mxu0
        %v534 = vadd.f32 %v345, %v533
        %v535 = vpop.f32.mrb[0].mxu0
        %v536 = vadd.f32 %v345, %v535
        %v537 = vpop.f32.mrb[0].mxu0
        %v538 = vpop.f32.mrb[0].mxu0
        %539 = vdwg.mxu0
        %v540 = vmin.f32 %v534, 20.0
        %v541 = vmin.f32 %v536, 20.0
        %v542 = vmul.f32 %v540, 1.442695
        %v543 = vpow.pop %v542
        %v544 = vmul.f32 %v541, 1.442695
        %v545 = vpow.pop %v544
        %v546 = vadd.f32 %v543, 1.0
        %v547 = vadd.f32 %v545, 1.0
        %v548 = vmul.f32 %v546, %v546
        %v549 = vmul.f32 %v547, %v547
        %v550 = vadd.f32 %v548, 1.0
        %v551 = vadd.f32 %v549, 1.0
        %v552 = vrcp.pop %v550
        %v553 = vrcp.pop %v551
        %v554 = vmul.f32 %v552, 2.0
        %v555 = vmul.f32 %v553, 2.0
        %v556 = vsub.f32 1.0, %v554
        %v557 = vsub.f32 1.0, %v555
        %v558 = vmul.f32 %v534, %v556
        %v559 = vmul.f32 %v536, %v557
        %v560 = vpack.c.bf16 %v558, %v558
        %v561 = vpack.c.bf16 %v559, %v559
        %v564 = vunpack.c.l.b16 %v560
        %v565 = vunpack.c.l.b16 %v561
        %v566 = vpack.c.b16 %v565, %v564
        %568 = vst [vmem:[%s310] sm:$0xff] %v566
        %s569 = smul.u32 2, %s14
        %p570 = scmp.lt.s32.totalorder %s569, 3
        %s571 = scalar_select %p570, %s569, 3
        %s572 = smul.addr %s571, 4
        %s573 = scalar_lea.vmem %s3, %s572
        // Predicated region
        $region71: #{hourglass_forward.7} parent=65 // pred_check
          %p574 = pneg %p100
        $region72: #{hourglass_forward.7} parent=65 // pred_check_branch
          %576 = sbr.rel (%p574) target = $region74
        $region73: #{hourglass_forward.7} parent=65 // pred_region
          %s577 = smul.u32 2, %s14
        $region74: #{hourglass_forward.7} parent=65 // pred_fallthru
          _
      $region66: #{hourglass_forward.7} parent=5 // pred_fallthru
        _
      %p578 = scmp.le.s32.totalorder 2, %s9
      // Predicated region
      $region75: #{hourglass_forward.7} parent=5 // pred_check
        %p579 = pneg %p578
      $region76: #{hourglass_forward.7} parent=5 // pred_check_branch
        %581 = sbr.rel (%p579) target = $region78
      $region77: #{hourglass_forward.7} parent=5 // pred_region
        %s582 = ssub.s32 %s9, 2
        // Predicated region
        $region79: #{hourglass_forward.7} parent=77 // pred_check
          %p583 = pneg %p106
        $region80: #{hourglass_forward.7} parent=77 // pred_check_branch
          %585 = sbr.rel (%p583) target = $region82
        $region81: #{hourglass_forward.7} parent=77 // pred_region
          %s586 = smul.u32 2, %s15
          %p587 = scmp.lt.s32.totalorder %s586, 3
          %s588 = scalar_select %p587, %s586, 3
          %s589 = smul.addr %s588, 4
          %s590 = scalar_lea.vmem %s3, %s589
        $region82: #{hourglass_forward.7} parent=77 // pred_fallthru
          _
      $region78: #{hourglass_forward.7} parent=5 // pred_fallthru
        _
    $region6: #{hourglass_forward.7} parent=1 // loop_footer
      %s13 = sadd.s32 1, %s9
    $region7: #{hourglass_forward.7} parent=1 // loop_footer_branch
      %8 = sbr.rel target = $region3
    $region8: #{hourglass_forward.7} parent=1 // loop_exit
      _

// kernel: hourglass_forward.8
$region0: #{hourglass_forward.8}
  #allocation0 [shape = 'u32[]', space=smem, size = 0x4, offset = 0x4, fixed_abs, tag = 'smem constant byte address 0x4 - core index']
  #allocation1 [shape = 'u32[144,128]{1,0:T(1,128)}', space=vmem, size = 0x12000, scoped, tag = 'internal scratch']
  %s0 = inlined_call_operand.vmem [shape: bf16[16,216], index: 0, kind: input, shape index: {}]
  %s1 = inlined_call_operand.vmem [shape: bf16[216,128], index: 1, kind: input, shape index: {}]
  %s2 = inlined_call_operand.vmem [shape: f32[16,1], index: 2, kind: input, shape index: {}]
  %s3 = inlined_call_operand.vmem [shape: bf16[16,128], index: 3, kind: output, shape index: {}]
  %s4 = sld [smem:[#allocation0]]
  $region22: #{hourglass_forward.8} parent=0
    _
  %s6 = ssub.s32 1, %s4
  %s7 = scalar_select 0, %s6, %s4
  // Predicated region
  $region2: #{hourglass_forward.8} parent=0 // pred_check
    _
  $region3: #{hourglass_forward.8} parent=0 // pred_check_branch
    %9 = sbr.rel (0) target = $region5
  $region4: #{hourglass_forward.8} parent=0 // pred_region
    _
  $region5: #{hourglass_forward.8} parent=0 // pred_fallthru
    _
  // Predicated region
  $region6: #{hourglass_forward.8} parent=0 // pred_check
    _
  $region7: #{hourglass_forward.8} parent=0 // pred_check_branch
    %11 = sbr.rel (0) target = $region9
  $region8: #{hourglass_forward.8} parent=0 // pred_region
    _
  $region9: #{hourglass_forward.8} parent=0 // pred_fallthru
    _
  // Predicated region
  $region10: #{hourglass_forward.8} parent=0 // pred_check
    _
  $region11: #{hourglass_forward.8} parent=0 // pred_check_branch
    %13 = sbr.rel (0) target = $region13
  $region12: #{hourglass_forward.8} parent=0 // pred_region
    _
  $region13: #{hourglass_forward.8} parent=0 // pred_fallthru
    _
  %v15 = vld [vmem:[%s0] sm:$0xff]
  %v16 = vld [vmem:[%s0 + $0x8] sm:$0xff]
  %v17 = vld [vmem:[%s1] sm:$0xf]
  %v18 = vld [vmem:[%s1 + $0x4] sm:$0xf]
  %v19 = vld [vmem:[%s1 + $0x8] sm:$0xf]
  %v20 = vld [vmem:[%s1 + $0xc] sm:$0xf]
  %v21 = vld [vmem:[%s1 + $0x10] sm:$0xf]
  %v22 = vld [vmem:[%s1 + $0x14] sm:$0xf]
  %v23 = vld [vmem:[%s1 + $0x18] sm:$0xf]
  %v24 = vld [vmem:[%s1 + $0x1c] sm:$0xf]
  %v25 = vld [vmem:[%s1 + $0x20] sm:$0xf]
  %v26 = vld [vmem:[%s1 + $0x24] sm:$0xf]
  %v27 = vld [vmem:[%s1 + $0x28] sm:$0xf]
  %v28 = vld [vmem:[%s1 + $0x2c] sm:$0xf]
  %v29 = vld [vmem:[%s1 + $0x30] sm:$0xf]
  %v30 = vld [vmem:[%s1 + $0x34] sm:$0xf]
  %v31 = vld [vmem:[%s1 + $0x38] sm:$0xf]
  %v32 = vld [vmem:[%s1 + $0x3c] sm:$0xf]
  %v33 = vld [vmem:[%s1 + $0x40] sm:$0xf]
  %v34 = vld [vmem:[%s1 + $0x44] sm:$0xf]
  %v35 = vld [vmem:[%s1 + $0x48] sm:$0xf]
  %v36 = vld [vmem:[%s1 + $0x4c] sm:$0xf]
  %v37 = vld [vmem:[%s1 + $0x50] sm:$0xf]
  %v38 = vld [vmem:[%s1 + $0x54] sm:$0xf]
  %v39 = vld [vmem:[%s1 + $0x58] sm:$0xf]
  %v40 = vld [vmem:[%s1 + $0x5c] sm:$0xf]
  %v41 = vld [vmem:[%s1 + $0x60] sm:$0xf]
  %v42 = vld [vmem:[%s1 + $0x64] sm:$0xf]
  %v43 = vld [vmem:[%s1 + $0x68] sm:$0xf]
  %v44 = vld [vmem:[%s2] sm:$0xff]
  %v45 = vld [vmem:[%s2 + $0x8] sm:$0xff]
  %47 = vset.pattern.permute.xlu0 0
  %48 = vperm.xlu0 %47, %v44
  %v49 = vpop.permute.xlu0 %48
  %52 = vset.pattern.permute.xlu0 0
  %53 = vperm.xlu0 %52, %v45
  %v54 = vpop.permute.xlu0 %53
  %v58 = vunpack.c.l.b16 %v15
  %v59 = vunpack.c.h.b16 %v15
  %v60 = vunpack.c.l.b16 %v16
  %v61 = vunpack.c.h.b16 %v16
  %v62 = vpack.c.b16 %v60, %v58
  %v63 = vpack.c.b16 %v61, %v59
  %v92 = vunpack.c.l.b16 %v17
  %v93 = vunpack.c.l.b16 %v18
  %v94 = vunpack.c.l.b16 %v19
  %v95 = vunpack.c.l.b16 %v20
  %v96 = vunpack.c.l.b16 %v21
  %v97 = vunpack.c.l.b16 %v22
  %v98 = vunpack.c.l.b16 %v23
  %v99 = vunpack.c.l.b16 %v24
  %v100 = vunpack.c.l.b16 %v25
  %v101 = vunpack.c.l.b16 %v26
  %v102 = vunpack.c.l.b16 %v27
  %v103 = vunpack.c.l.b16 %v28
  %v104 = vunpack.c.l.b16 %v29
  %v105 = vunpack.c.l.b16 %v30
  %v106 = vunpack.c.l.b16 %v31
  %v107 = vunpack.c.l.b16 %v32
  %v108 = vunpack.c.l.b16 %v33
  %v109 = vunpack.c.l.b16 %v34
  %v110 = vunpack.c.l.b16 %v35
  %v111 = vunpack.c.l.b16 %v36
  %v112 = vunpack.c.l.b16 %v37
  %v113 = vunpack.c.l.b16 %v38
  %v114 = vunpack.c.l.b16 %v39
  %v115 = vunpack.c.l.b16 %v40
  %v116 = vunpack.c.l.b16 %v41
  %v117 = vunpack.c.l.b16 %v42
  %v118 = vunpack.c.l.b16 %v43
  %v119 = vpack.c.b16 %v93, %v92
  %v120 = vpack.c.b16 %v95, %v94
  %v121 = vpack.c.b16 %v97, %v96
  %v122 = vpack.c.b16 %v99, %v98
  %v123 = vpack.c.b16 %v101, %v100
  %v124 = vpack.c.b16 %v103, %v102
  %v125 = vpack.c.b16 %v105, %v104
  %v126 = vpack.c.b16 %v107, %v106
  %v127 = vpack.c.b16 %v109, %v108
  %v128 = vpack.c.b16 %v111, %v110
  %v129 = vpack.c.b16 %v113, %v112
  %v130 = vpack.c.b16 %v115, %v114
  %v131 = vpack.c.b16 %v117, %v116
  %v132 = vpack.c.b16 %v118, %v118
  %vm146 = vcmask 719872
  %v148 = vsel %vm146, %v63, 0
  %vm150 = vcmask 1043456
  %v152 = vsel %vm150, %v132, 0
  %154 = vmatprep.subr.bf16.mxu0 0
  %155 = vmatpush1.bf16.msra.mxu0 %v119
  %156 = vmatprep.subr.bf16.mxu0 0
  %157 = vmatpush1.bf16.msra.mxu0 %v120
  %158 = vmatprep.subr.bf16.mxu0 0
  %159 = vmatpush1.bf16.msra.mxu0 %v121
  %160 = vmatprep.subr.bf16.mxu0 0
  %161 = vmatpush1.bf16.msra.mxu0 %v122
  %162 = vmatprep.subr.bf16.mxu0 0
  %163 = vmatpush1.bf16.msra.mxu0 %v123
  %164 = vmatprep.subr.bf16.mxu0 0
  %165 = vmatpush1.bf16.msra.mxu0 %v124
  %166 = vmatprep.subr.bf16.mxu0 0
  %167 = vmatpush1.bf16.msra.mxu0 %v125
  %168 = vmatprep.subr.bf16.mxu0 0
  %169 = vmatpush1.bf16.msra.mxu0 %v126
  %170 = vmatprep.subr.bf16.mxu0 0
  %171 = vmatpush1.bf16.msra.mxu0 %v127
  %172 = vmatprep.subr.bf16.mxu0 0
  %173 = vmatpush1.bf16.msra.mxu0 %v128
  %174 = vmatprep.subr.bf16.mxu0 0
  %175 = vmatpush1.bf16.msra.mxu0 %v129
  %176 = vmatprep.subr.bf16.mxu0 0
  %177 = vmatpush1.bf16.msra.mxu0 %v130
  %178 = vmatprep.subr.bf16.mxu0 0
  %179 = vmatpush1.bf16.msra.mxu0 %v131
  %180 = vmatprep.subr.bf16.mxu0 0
  %181 = vmatpush1.bf16.msra.mxu0 %v152
  %182 = vmatprep.subr.bf16.mxu0 0
  %183 = vmatpush1.bf16.msra.mxu0 0
  %184 = vmatprep.subr.bf16.mxu0 0
  %185 = vmatpush1.bf16.msra.mxu0 0
  %186 = vmatprep.mubr.bf16.mxu0 %v148
  %187 = vmatmul.mubr.bf16.gmra.mrb[0].mxu0 %v62
  %v188 = vpop.f32.mrb[0].mxu0
  %v189 = vadd.f32 %v49, %v188
  %v190 = vpop.f32.mrb[0].mxu0
  %v191 = vpop.f32.mrb[0].mxu0
  %v192 = vadd.f32 %v54, %v191
  %v193 = vpop.f32.mrb[0].mxu0
  %194 = vdwg.mxu0
  %v195 = vmin.f32 %v189, 20.0
  %v196 = vmin.f32 %v192, 20.0
  %v197 = vmul.f32 %v195, 1.442695
  %v198 = vpow.pop %v197
  %v199 = vmul.f32 %v196, 1.442695
  %v200 = vpow.pop %v199
  %v201 = vadd.f32 %v198, 1.0
  %v202 = vadd.f32 %v200, 1.0
  %v203 = vmul.f32 %v201, %v201
  %v204 = vmul.f32 %v202, %v202
  %v205 = vadd.f32 %v203, 1.0
  %v206 = vadd.f32 %v204, 1.0
  %v207 = vrcp.pop %v205
  %v208 = vrcp.pop %v206
  %v209 = vmul.f32 %v207, 2.0
  %v210 = vmul.f32 %v208, 2.0
  %v211 = vsub.f32 1.0, %v209
  %v212 = vsub.f32 1.0, %v210
  %v213 = vmul.f32 %v189, %v211
  %v214 = vmul.f32 %v192, %v212
  %v215 = vpack.c.bf16 %v214, %v213
  %v217 = vunpack.c.l.b16 %v215
  %v218 = vunpack.c.h.b16 %v215
  %v219 = vpack.c.b16 %v217, %v217
  %v220 = vpack.c.b16 %v218, %v218
  %223 = vst [vmem:[%s3] sm:$0xf] %v219
  %224 = vst [vmem:[%s3 + $0x4] sm:$0xf] %v220
  // Predicated region
  $region14: #{hourglass_forward.8} parent=0 // pred_check
    _
  $region15: #{hourglass_forward.8} parent=0 // pred_check_branch
    %226 = sbr.rel (0) target = $region17
  $region16: #{hourglass_forward.8} parent=0 // pred_region
    _
  $region17: #{hourglass_forward.8} parent=0 // pred_fallthru
    _
  // Predicated region
  $region18: #{hourglass_forward.8} parent=0 // pred_check
    _
  $region19: #{hourglass_forward.8} parent=0 // pred_check_branch
    %228 = sbr.rel (0) target = $region21
  $region20: #{hourglass_forward.8} parent=0 // pred_region
    _
  $region21: #{hourglass_forward.8} parent=0 // pred_fallthru
    _

// kernel: hourglass_forward.9
$region0: #{hourglass_forward.9}
  #allocation0 [shape = 'u32[]', space=smem, size = 0x4, offset = 0x4, fixed_abs, tag = 'smem constant byte address 0x4 - core index']
  #allocation1 [shape = 'u32[144,128]{1,0:T(1,128)}', space=vmem, size = 0x12000, scoped, tag = 'internal scratch']
  %s0 = inlined_call_operand.vmem [shape: bf16[16,432], index: 0, kind: input, shape index: {}]
  %s1 = inlined_call_operand.vmem [shape: bf16[432,128], index: 1, kind: input, shape index: {}]
  %s2 = inlined_call_operand.vmem [shape: f32[16,1], index: 2, kind: input, shape index: {}]
  %s3 = inlined_call_operand.vmem [shape: bf16[16,128], index: 3, kind: output, shape index: {}]
  %s4 = sld [smem:[#allocation0]]
  $region22: #{hourglass_forward.9} parent=0
    _
  %s6 = ssub.s32 1, %s4
  %s7 = scalar_select 0, %s6, %s4
  // Predicated region
  $region2: #{hourglass_forward.9} parent=0 // pred_check
    _
  $region3: #{hourglass_forward.9} parent=0 // pred_check_branch
    %9 = sbr.rel (0) target = $region5
  $region4: #{hourglass_forward.9} parent=0 // pred_region
    _
  $region5: #{hourglass_forward.9} parent=0 // pred_fallthru
    _
  // Predicated region
  $region6: #{hourglass_forward.9} parent=0 // pred_check
    _
  $region7: #{hourglass_forward.9} parent=0 // pred_check_branch
    %11 = sbr.rel (0) target = $region9
  $region8: #{hourglass_forward.9} parent=0 // pred_region
    _
  $region9: #{hourglass_forward.9} parent=0 // pred_fallthru
    _
  // Predicated region
  $region10: #{hourglass_forward.9} parent=0 // pred_check
    _
  $region11: #{hourglass_forward.9} parent=0 // pred_check_branch
    %13 = sbr.rel (0) target = $region13
  $region12: #{hourglass_forward.9} parent=0 // pred_region
    _
  $region13: #{hourglass_forward.9} parent=0 // pred_fallthru
    _
  %v15 = vld [vmem:[%s0] sm:$0xff]
  %v16 = vld [vmem:[%s0 + $0x8] sm:$0xff]
  %v17 = vld [vmem:[%s0 + $0x10] sm:$0xff]
  %v18 = vld [vmem:[%s0 + $0x18] sm:$0xff]
  %v19 = vld [vmem:[%s1] sm:$0xf]
  %v20 = vld [vmem:[%s1 + $0x4] sm:$0xf]
  %v21 = vld [vmem:[%s1 + $0x8] sm:$0xf]
  %v22 = vld [vmem:[%s1 + $0xc] sm:$0xf]
  %v23 = vld [vmem:[%s1 + $0x10] sm:$0xf]
  %v24 = vld [vmem:[%s1 + $0x14] sm:$0xf]
  %v25 = vld [vmem:[%s1 + $0x18] sm:$0xf]
  %v26 = vld [vmem:[%s1 + $0x1c] sm:$0xf]
  %v27 = vld [vmem:[%s1 + $0x20] sm:$0xf]
  %v28 = vld [vmem:[%s1 + $0x24] sm:$0xf]
  %v29 = vld [vmem:[%s1 + $0x28] sm:$0xf]
  %v30 = vld [vmem:[%s1 + $0x2c] sm:$0xf]
  %v31 = vld [vmem:[%s1 + $0x30] sm:$0xf]
  %v32 = vld [vmem:[%s1 + $0x34] sm:$0xf]
  %v33 = vld [vmem:[%s1 + $0x38] sm:$0xf]
  %v34 = vld [vmem:[%s1 + $0x3c] sm:$0xf]
  %v35 = vld [vmem:[%s1 + $0x40] sm:$0xf]
  %v36 = vld [vmem:[%s1 + $0x44] sm:$0xf]
  %v37 = vld [vmem:[%s1 + $0x48] sm:$0xf]
  %v38 = vld [vmem:[%s1 + $0x4c] sm:$0xf]
  %v39 = vld [vmem:[%s1 + $0x50] sm:$0xf]
  %v40 = vld [vmem:[%s1 + $0x54] sm:$0xf]
  %v41 = vld [vmem:[%s1 + $0x58] sm:$0xf]
  %v42 = vld [vmem:[%s1 + $0x5c] sm:$0xf]
  %v43 = vld [vmem:[%s1 + $0x60] sm:$0xf]
  %v44 = vld [vmem:[%s1 + $0x64] sm:$0xf]
  %v45 = vld [vmem:[%s1 + $0x68] sm:$0xf]
  %v46 = vld [vmem:[%s1 + $0x6c] sm:$0xf]
  %v47 = vld [vmem:[%s1 + $0x70] sm:$0xf]
  %v48 = vld [vmem:[%s1 + $0x74] sm:$0xf]
  %v49 = vld [vmem:[%s1 + $0x78] sm:$0xf]
  %v50 = vld [vmem:[%s1 + $0x7c] sm:$0xf]
  %v51 = vld [vmem:[%s1 + $0x80] sm:$0xf]
  %v52 = vld [vmem:[%s1 + $0x84] sm:$0xf]
  %v53 = vld [vmem:[%s1 + $0x88] sm:$0xf]
  %v54 = vld [vmem:[%s1 + $0x8c] sm:$0xf]
  %v55 = vld [vmem:[%s1 + $0x90] sm:$0xf]
  %v56 = vld [vmem:[%s1 + $0x94] sm:$0xf]
  %v57 = vld [vmem:[%s1 + $0x98] sm:$0xf]
  %v58 = vld [vmem:[%s1 + $0x9c] sm:$0xf]
  %v59 = vld [vmem:[%s1 + $0xa0] sm:$0xf]
  %v60 = vld [vmem:[%s1 + $0xa4] sm:$0xf]
  %v61 = vld [vmem:[%s1 + $0xa8] sm:$0xf]
  %v62 = vld [vmem:[%s1 + $0xac] sm:$0xf]
  %v63 = vld [vmem:[%s1 + $0xb0] sm:$0xf]
  %v64 = vld [vmem:[%s1 + $0xb4] sm:$0xf]
  %v65 = vld [vmem:[%s1 + $0xb8] sm:$0xf]
  %v66 = vld [vmem:[%s1 + $0xbc] sm:$0xf]
  %v67 = vld [vmem:[%s1 + $0xc0] sm:$0xf]
  %v68 = vld [vmem:[%s1 + $0xc4] sm:$0xf]
  %v69 = vld [vmem:[%s1 + $0xc8] sm:$0xf]
  %v70 = vld [vmem:[%s1 + $0xcc] sm:$0xf]
  %v71 = vld [vmem:[%s1 + $0xd0] sm:$0xf]
  %v72 = vld [vmem:[%s1 + $0xd4] sm:$0xf]
  %v73 = vld [vmem:[%s2] sm:$0xff]
  %v74 = vld [vmem:[%s2 + $0x8] sm:$0xff]
  %76 = vset.pattern.permute.xlu0 0
  %77 = vperm.xlu0 %76, %v73
  %v78 = vpop.permute.xlu0 %77
  %81 = vset.pattern.permute.xlu0 0
  %82 = vperm.xlu0 %81, %v74
  %v83 = vpop.permute.xlu0 %82
  %v89 = vunpack.c.l.b16 %v15
  %v90 = vunpack.c.h.b16 %v15
  %v91 = vunpack.c.l.b16 %v16
  %v92 = vunpack.c.h.b16 %v16
  %v93 = vunpack.c.l.b16 %v17
  %v94 = vunpack.c.h.b16 %v17
  %v95 = vunpack.c.l.b16 %v18
  %v96 = vunpack.c.h.b16 %v18
  %v97 = vpack.c.b16 %v93, %v89
  %v98 = vpack.c.b16 %v94, %v90
  %v99 = vpack.c.b16 %v95, %v91
  %v100 = vpack.c.b16 %v96, %v92
  %v158 = vunpack.c.l.b16 %v19
  %v159 = vunpack.c.l.b16 %v20
  %v160 = vunpack.c.l.b16 %v21
  %v161 = vunpack.c.l.b16 %v22
  %v162 = vunpack.c.l.b16 %v23
  %v163 = vunpack.c.l.b16 %v24
  %v164 = vunpack.c.l.b16 %v25
  %v165 = vunpack.c.l.b16 %v26
  %v166 = vunpack.c.l.b16 %v27
  %v167 = vunpack.c.l.b16 %v28
  %v168 = vunpack.c.l.b16 %v29
  %v169 = vunpack.c.l.b16 %v30
  %v170 = vunpack.c.l.b16 %v31
  %v171 = vunpack.c.l.b16 %v32
  %v172 = vunpack.c.l.b16 %v33
  %v173 = vunpack.c.l.b16 %v34
  %v174 = vunpack.c.l.b16 %v35
  %v175 = vunpack.c.l.b16 %v36
  %v176 = vunpack.c.l.b16 %v37
  %v177 = vunpack.c.l.b16 %v38
  %v178 = vunpack.c.l.b16 %v39
  %v179 = vunpack.c.l.b16 %v40
  %v180 = vunpack.c.l.b16 %v41
  %v181 = vunpack.c.l.b16 %v42
  %v182 = vunpack.c.l.b16 %v43
  %v183 = vunpack.c.l.b16 %v44
  %v184 = vunpack.c.l.b16 %v45
  %v185 = vunpack.c.l.b16 %v46
  %v186 = vunpack.c.l.b16 %v47
  %v187 = vunpack.c.l.b16 %v48
  %v188 = vunpack.c.l.b16 %v49
  %v189 = vunpack.c.l.b16 %v50
  %v190 = vunpack.c.l.b16 %v51
  %v191 = vunpack.c.l.b16 %v52
  %v192 = vunpack.c.l.b16 %v53
  %v193 = vunpack.c.l.b16 %v54
  %v194 = vunpack.c.l.b16 %v55
  %v195 = vunpack.c.l.b16 %v56
  %v196 = vunpack.c.l.b16 %v57
  %v197 = vunpack.c.l.b16 %v58
  %v198 = vunpack.c.l.b16 %v59
  %v199 = vunpack.c.l.b16 %v60
  %v200 = vunpack.c.l.b16 %v61
  %v201 = vunpack.c.l.b16 %v62
  %v202 = vunpack.c.l.b16 %v63
  %v203 = vunpack.c.l.b16 %v64
  %v204 = vunpack.c.l.b16 %v65
  %v205 = vunpack.c.l.b16 %v66
  %v206 = vunpack.c.l.b16 %v67
  %v207 = vunpack.c.l.b16 %v68
  %v208 = vunpack.c.l.b16 %v69
  %v209 = vunpack.c.l.b16 %v70
  %v210 = vunpack.c.l.b16 %v71
  %v211 = vunpack.c.l.b16 %v72
  %v212 = vpack.c.b16 %v159, %v158
  %v213 = vpack.c.b16 %v161, %v160
  %v214 = vpack.c.b16 %v163, %v162
  %v215 = vpack.c.b16 %v165, %v164
  %v216 = vpack.c.b16 %v167, %v166
  %v217 = vpack.c.b16 %v169, %v168
  %v218 = vpack.c.b16 %v171, %v170
  %v219 = vpack.c.b16 %v173, %v172
  %v220 = vpack.c.b16 %v175, %v174
  %v221 = vpack.c.b16 %v177, %v176
  %v222 = vpack.c.b16 %v179, %v178
  %v223 = vpack.c.b16 %v181, %v180
  %v224 = vpack.c.b16 %v183, %v182
  %v225 = vpack.c.b16 %v185, %v184
  %v226 = vpack.c.b16 %v187, %v186
  %v227 = vpack.c.b16 %v189, %v188
  %v228 = vpack.c.b16 %v191, %v190
  %v229 = vpack.c.b16 %v193, %v192
  %v230 = vpack.c.b16 %v195, %v194
  %v231 = vpack.c.b16 %v197, %v196
  %v232 = vpack.c.b16 %v199, %v198
  %v233 = vpack.c.b16 %v201, %v200
  %v234 = vpack.c.b16 %v203, %v202
  %v235 = vpack.c.b16 %v205, %v204
  %v236 = vpack.c.b16 %v207, %v206
  %v237 = vpack.c.b16 %v209, %v208
  %v238 = vpack.c.b16 %v211, %v210
  %vm266 = vcmask 392192
  %v268 = vsel %vm266, %v100, 0
  %270 = vmatprep.subr.bf16.mxu0 0
  %271 = vmatpush1.bf16.msra.mxu0 %v212
  %272 = vmatprep.subr.bf16.mxu0 0
  %273 = vmatpush1.bf16.msra.mxu0 %v213
  %274 = vmatprep.subr.bf16.mxu0 0
  %275 = vmatpush1.bf16.msra.mxu0 %v214
  %276 = vmatprep.subr.bf16.mxu0 0
  %277 = vmatpush1.bf16.msra.mxu0 %v215
  %278 = vmatprep.subr.bf16.mxu0 0
  %279 = vmatpush1.bf16.msra.mxu0 %v216
  %280 = vmatprep.subr.bf16.mxu0 0
  %281 = vmatpush1.bf16.msra.mxu0 %v217
  %282 = vmatprep.subr.bf16.mxu0 0
  %283 = vmatpush1.bf16.msra.mxu0 %v218
  %284 = vmatprep.subr.bf16.mxu0 0
  %285 = vmatpush1.bf16.msra.mxu0 %v219
  %286 = vmatprep.subr.bf16.mxu0 0
  %287 = vmatpush1.bf16.msra.mxu0 %v220
  %288 = vmatprep.subr.bf16.mxu0 0
  %289 = vmatpush1.bf16.msra.mxu0 %v221
  %290 = vmatprep.subr.bf16.mxu0 0
  %291 = vmatpush1.bf16.msra.mxu0 %v222
  %292 = vmatprep.subr.bf16.mxu0 0
  %293 = vmatpush1.bf16.msra.mxu0 %v223
  %294 = vmatprep.subr.bf16.mxu0 0
  %295 = vmatpush1.bf16.msra.mxu0 %v224
  %296 = vmatprep.subr.bf16.mxu0 0
  %297 = vmatpush1.bf16.msra.mxu0 %v225
  %298 = vmatprep.subr.bf16.mxu0 0
  %299 = vmatpush1.bf16.msra.mxu0 %v226
  %300 = vmatprep.subr.bf16.mxu0 0
  %301 = vmatpush1.bf16.msra.mxu0 %v227
  %302 = vmatprep.mubr.bf16.mxu0 %v98
  %303 = vmatmul.mubr.bf16.gmra.mrb[0].mxu0 %v97
  %v304 = vpop.f32.mrb[0].mxu0
  %v305 = vadd.f32 %v78, %v304
  %v306 = vpop.f32.mrb[0].mxu0
  %v307 = vpop.f32.mrb[0].mxu0
  %v308 = vadd.f32 %v83, %v307
  %v309 = vpop.f32.mrb[0].mxu0
  %310 = vdwg.mxu0
  %311 = vmatprep.subr.bf16.mxu0 0
  %312 = vmatpush1.bf16.msra.mxu0 %v228
  %313 = vmatprep.subr.bf16.mxu0 0
  %314 = vmatpush1.bf16.msra.mxu0 %v229
  %315 = vmatprep.subr.bf16.mxu0 0
  %316 = vmatpush1.bf16.msra.mxu0 %v230
  %317 = vmatprep.subr.bf16.mxu0 0
  %318 = vmatpush1.bf16.msra.mxu0 %v231
  %319 = vmatprep.subr.bf16.mxu0 0
  %320 = vmatpush1.bf16.msra.mxu0 %v232
  %321 = vmatprep.subr.bf16.mxu0 0
  %322 = vmatpush1.bf16.msra.mxu0 %v233
  %323 = vmatprep.subr.bf16.mxu0 0
  %324 = vmatpush1.bf16.msra.mxu0 %v234
  %325 = vmatprep.subr.bf16.mxu0 0
  %326 = vmatpush1.bf16.msra.mxu0 %v235
  %327 = vmatprep.subr.bf16.mxu0 0
  %328 = vmatpush1.bf16.msra.mxu0 %v236
  %329 = vmatprep.subr.bf16.mxu0 0
  %330 = vmatpush1.bf16.msra.mxu0 %v237
  %331 = vmatprep.subr.bf16.mxu0 0
  %332 = vmatpush1.bf16.msra.mxu0 %v238
  %333 = vmatprep.subr.bf16.mxu0 0
  %334 = vmatpush1.bf16.msra.mxu0 0
  %335 = vmatprep.subr.bf16.mxu0 0
  %336 = vmatpush1.bf16.msra.mxu0 0
  %337 = vmatprep.subr.bf16.mxu0 0
  %338 = vmatpush1.bf16.msra.mxu0 0
  %339 = vmatprep.subr.bf16.mxu0 0
  %340 = vmatpush1.bf16.msra.mxu0 0
  %341 = vmatprep.subr.bf16.mxu0 0
  %342 = vmatpush1.bf16.msra.mxu0 0
  %343 = vmatprep.mubr.bf16.mxu0 %v268
  %344 = vmatmul.mubr.bf16.gmra.mrb[0].mxu0 %v99
  %v345 = vpop.f32.mrb[0].mxu0
  %v346 = vadd.f32 %v305, %v345
  %v347 = vpop.f32.mrb[0].mxu0
  %v348 = vpop.f32.mrb[0].mxu0
  %v349 = vadd.f32 %v308, %v348
  %v350 = vpop.f32.mrb[0].mxu0
  %351 = vdwg.mxu0
  %v352 = vmin.f32 %v346, 20.0
  %v353 = vmin.f32 %v349, 20.0
  %v354 = vmul.f32 %v352, 1.442695
  %v355 = vpow.pop %v354
  %v356 = vmul.f32 %v353, 1.442695
  %v357 = vpow.pop %v356
  %v358 = vadd.f32 %v355, 1.0
  %v359 = vadd.f32 %v357, 1.0
  %v360 = vmul.f32 %v358, %v358
  %v361 = vmul.f32 %v359, %v359
  %v362 = vadd.f32 %v360, 1.0
  %v363 = vadd.f32 %v361, 1.0
  %v364 = vrcp.pop %v362
  %v365 = vrcp.pop %v363
  %v366 = vmul.f32 %v364, 2.0
  %v367 = vmul.f32 %v365, 2.0
  %v368 = vsub.f32 1.0, %v366
  %v369 = vsub.f32 1.0, %v367
  %v370 = vmul.f32 %v346, %v368
  %v371 = vmul.f32 %v349, %v369
  %v372 = vpack.c.bf16 %v371, %v370
  %v374 = vunpack.c.l.b16 %v372
  %v375 = vunpack.c.h.b16 %v372
  %v376 = vpack.c.b16 %v374, %v374
  %v377 = vpack.c.b16 %v375, %v375
  %380 = vst [vmem:[%s3] sm:$0xf] %v376
  %381 = vst [vmem:[%s3 + $0x4] sm:$0xf] %v377
  // Predicated region
  $region14: #{hourglass_forward.9} parent=0 // pred_check
    _
  $region15: #{hourglass_forward.9} parent=0 // pred_check_branch
    %383 = sbr.rel (0) target = $region17
  $region16: #{hourglass_forward.9} parent=0 // pred_region
    _
  $region17: #{hourglass_forward.9} parent=0 // pred_fallthru
    _
  // Predicated region
  $region18: #{hourglass_forward.9} parent=0 // pred_check
    _
  $region19: #{hourglass_forward.9} parent=0 // pred_check_branch
    %385 = sbr.rel (0) target = $region21
  $region20: #{hourglass_forward.9} parent=0 // pred_region
    _
  $region21: #{hourglass_forward.9} parent=0 // pred_fallthru
    _

// kernel: hourglass_forward.10
$region0: #{hourglass_forward.10}
  #allocation0 [shape = 'u32[]', space=smem, size = 0x4, offset = 0x4, fixed_abs, tag = 'smem constant byte address 0x4 - core index']
  #allocation1 [shape = 'u32[144,128]{1,0:T(1,128)}', space=vmem, size = 0x12000, scoped, tag = 'internal scratch']
  %s0 = inlined_call_operand.vmem [shape: bf16[64,192], index: 0, kind: input, shape index: {}]
  %s1 = inlined_call_operand.vmem [shape: bf16[192,128], index: 1, kind: input, shape index: {}]
  %s2 = inlined_call_operand.vmem [shape: f32[64,1], index: 2, kind: input, shape index: {}]
  %s3 = inlined_call_operand.vmem [shape: bf16[64,128], index: 3, kind: output, shape index: {}]
  %s4 = sld [smem:[#allocation0]]
  $region22: #{hourglass_forward.10} parent=0
    _
  %s6 = ssub.s32 1, %s4
  %s7 = scalar_select 0, %s6, %s4
  // Predicated region
  $region2: #{hourglass_forward.10} parent=0 // pred_check
    _
  $region3: #{hourglass_forward.10} parent=0 // pred_check_branch
    %9 = sbr.rel (0) target = $region5
  $region4: #{hourglass_forward.10} parent=0 // pred_region
    _
  $region5: #{hourglass_forward.10} parent=0 // pred_fallthru
    _
  // Predicated region
  $region6: #{hourglass_forward.10} parent=0 // pred_check
    _
  $region7: #{hourglass_forward.10} parent=0 // pred_check_branch
    %11 = sbr.rel (0) target = $region9
  $region8: #{hourglass_forward.10} parent=0 // pred_region
    _
  $region9: #{hourglass_forward.10} parent=0 // pred_fallthru
    _
  // Predicated region
  $region10: #{hourglass_forward.10} parent=0 // pred_check
    _
  $region11: #{hourglass_forward.10} parent=0 // pred_check_branch
    %13 = sbr.rel (0) target = $region13
  $region12: #{hourglass_forward.10} parent=0 // pred_region
    _
  $region13: #{hourglass_forward.10} parent=0 // pred_fallthru
    _
  %v15 = vld [vmem:[%s0] sm:$0xff]
  %v16 = vld [vmem:[%s0 + $0x8] sm:$0xff]
  %v17 = vld [vmem:[%s0 + $0x10] sm:$0xff]
  %v18 = vld [vmem:[%s0 + $0x18] sm:$0xff]
  %v19 = vld [vmem:[%s0 + $0x20] sm:$0xff]
  %v20 = vld [vmem:[%s0 + $0x28] sm:$0xff]
  %v21 = vld [vmem:[%s0 + $0x30] sm:$0xff]
  %v22 = vld [vmem:[%s0 + $0x38] sm:$0xff]
  %v23 = vld [vmem:[%s1] sm:$0xf]
  %v24 = vld [vmem:[%s1 + $0x4] sm:$0xf]
  %v25 = vld [vmem:[%s1 + $0x8] sm:$0xf]
  %v26 = vld [vmem:[%s1 + $0xc] sm:$0xf]
  %v27 = vld [vmem:[%s1 + $0x10] sm:$0xf]
  %v28 = vld [vmem:[%s1 + $0x14] sm:$0xf]
  %v29 = vld [vmem:[%s1 + $0x18] sm:$0xf]
  %v30 = vld [vmem:[%s1 + $0x1c] sm:$0xf]
  %v31 = vld [vmem:[%s1 + $0x20] sm:$0xf]
  %v32 = vld [vmem:[%s1 + $0x24] sm:$0xf]
  %v33 = vld [vmem:[%s1 + $0x28] sm:$0xf]
  %v34 = vld [vmem:[%s1 + $0x2c] sm:$0xf]
  %v35 = vld [vmem:[%s1 + $0x30] sm:$0xf]
  %v36 = vld [vmem:[%s1 + $0x34] sm:$0xf]
  %v37 = vld [vmem:[%s1 + $0x38] sm:$0xf]
  %v38 = vld [vmem:[%s1 + $0x3c] sm:$0xf]
  %v39 = vld [vmem:[%s1 + $0x40] sm:$0xf]
  %v40 = vld [vmem:[%s1 + $0x44] sm:$0xf]
  %v41 = vld [vmem:[%s1 + $0x48] sm:$0xf]
  %v42 = vld [vmem:[%s1 + $0x4c] sm:$0xf]
  %v43 = vld [vmem:[%s1 + $0x50] sm:$0xf]
  %v44 = vld [vmem:[%s1 + $0x54] sm:$0xf]
  %v45 = vld [vmem:[%s1 + $0x58] sm:$0xf]
  %v46 = vld [vmem:[%s1 + $0x5c] sm:$0xf]
  %v47 = vld [vmem:[%s2] sm:$0xff]
  %v48 = vld [vmem:[%s2 + $0x8] sm:$0xff]
  %v49 = vld [vmem:[%s2 + $0x10] sm:$0xff]
  %v50 = vld [vmem:[%s2 + $0x18] sm:$0xff]
  %v51 = vld [vmem:[%s2 + $0x20] sm:$0xff]
  %v52 = vld [vmem:[%s2 + $0x28] sm:$0xff]
  %v53 = vld [vmem:[%s2 + $0x30] sm:$0xff]
  %v54 = vld [vmem:[%s2 + $0x38] sm:$0xff]
  %56 = vset.pattern.permute.xlu0 0
  %57 = vperm.xlu0 %56, %v47
  %v58 = vpop.permute.xlu0 %57
  %61 = vset.pattern.permute.xlu0 0
  %62 = vperm.xlu0 %61, %v48
  %v63 = vpop.permute.xlu0 %62
  %66 = vset.pattern.permute.xlu0 0
  %67 = vperm.xlu0 %66, %v49
  %v68 = vpop.permute.xlu0 %67
  %71 = vset.pattern.permute.xlu0 0
  %72 = vperm.xlu0 %71, %v50
  %v73 = vpop.permute.xlu0 %72
  %76 = vset.pattern.permute.xlu0 0
  %77 = vperm.xlu0 %76, %v51
  %v78 = vpop.permute.xlu0 %77
  %81 = vset.pattern.permute.xlu0 0
  %82 = vperm.xlu0 %81, %v52
  %v83 = vpop.permute.xlu0 %82
  %86 = vset.pattern.permute.xlu0 0
  %87 = vperm.xlu0 %86, %v53
  %v88 = vpop.permute.xlu0 %87
  %91 = vset.pattern.permute.xlu0 0
  %92 = vperm.xlu0 %91, %v54
  %v93 = vpop.permute.xlu0 %92
  %v103 = vunpack.c.l.b16 %v15
  %v104 = vunpack.c.h.b16 %v15
  %v105 = vunpack.c.l.b16 %v16
  %v106 = vunpack.c.h.b16 %v16
  %v107 = vunpack.c.l.b16 %v17
  %v108 = vunpack.c.h.b16 %v17
  %v109 = vunpack.c.l.b16 %v18
  %v110 = vunpack.c.h.b16 %v18
  %v111 = vunpack.c.l.b16 %v19
  %v112 = vunpack.c.h.b16 %v19
  %v113 = vunpack.c.l.b16 %v20
  %v114 = vunpack.c.h.b16 %v20
  %v115 = vunpack.c.l.b16 %v21
  %v116 = vunpack.c.h.b16 %v21
  %v117 = vunpack.c.l.b16 %v22
  %v118 = vunpack.c.h.b16 %v22
  %v119 = vpack.c.b16 %v105, %v103
  %v120 = vpack.c.b16 %v106, %v104
  %v121 = vpack.c.b16 %v109, %v107
  %v122 = vpack.c.b16 %v110, %v108
  %v123 = vpack.c.b16 %v113, %v111
  %v124 = vpack.c.b16 %v114, %v112
  %v125 = vpack.c.b16 %v117, %v115
  %v126 = vpack.c.b16 %v118, %v116
  %v155 = vunpack.c.l.b16 %v23
  %v156 = vunpack.c.l.b16 %v24
  %v157 = vunpack.c.l.b16 %v25
  %v158 = vunpack.c.l.b16 %v26
  %v159 = vunpack.c.l.b16 %v27
  %v160 = vunpack.c.l.b16 %v28
  %v161 = vunpack.c.l.b16 %v29
  %v162 = vunpack.c.l.b16 %v30
  %v163 = vunpack.c.l.b16 %v31
  %v164 = vunpack.c.l.b16 %v32
  %v165 = vunpack.c.l.b16 %v33
  %v166 = vunpack.c.l.b16 %v34
  %v167 = vunpack.c.l.b16 %v35
  %v168 = vunpack.c.l.b16 %v36
  %v169 = vunpack.c.l.b16 %v37
  %v170 = vunpack.c.l.b16 %v38
  %v171 = vunpack.c.l.b16 %v39
  %v172 = vunpack.c.l.b16 %v40
  %v173 = vunpack.c.l.b16 %v41
  %v174 = vunpack.c.l.b16 %v42
  %v175 = vunpack.c.l.b16 %v43
  %v176 = vunpack.c.l.b16 %v44
  %v177 = vunpack.c.l.b16 %v45
  %v178 = vunpack.c.l.b16 %v46
  %v179 = vpack.c.b16 %v156, %v155
  %v180 = vpack.c.b16 %v158, %v157
  %v181 = vpack.c.b16 %v160, %v159
  %v182 = vpack.c.b16 %v162, %v161
  %v183 = vpack.c.b16 %v164, %v163
  %v184 = vpack.c.b16 %v166, %v165
  %v185 = vpack.c.b16 %v168, %v167
  %v186 = vpack.c.b16 %v170, %v169
  %v187 = vpack.c.b16 %v172, %v171
  %v188 = vpack.c.b16 %v174, %v173
  %v189 = vpack.c.b16 %v176, %v175
  %v190 = vpack.c.b16 %v178, %v177
  %vm203 = vcmask 523264
  %v205 = vsel %vm203, %v120, 0
  %v208 = vsel %vm203, %v122, 0
  %v211 = vsel %vm203, %v124, 0
  %v214 = vsel %vm203, %v126, 0
  %216 = vmatprep.subr.bf16.mxu0 0
  %217 = vmatpush1.bf16.msra.mxu0 %v179
  %218 = vmatprep.subr.bf16.mxu0 0
  %219 = vmatpush1.bf16.msra.mxu0 %v180
  %220 = vmatprep.subr.bf16.mxu0 0
  %221 = vmatpush1.bf16.msra.mxu0 %v181
  %222 = vmatprep.subr.bf16.mxu0 0
  %223 = vmatpush1.bf16.msra.mxu0 %v182
  %224 = vmatprep.subr.bf16.mxu0 0
  %225 = vmatpush1.bf16.msra.mxu0 %v183
  %226 = vmatprep.subr.bf16.mxu0 0
  %227 = vmatpush1.bf16.msra.mxu0 %v184
  %228 = vmatprep.subr.bf16.mxu0 0
  %229 = vmatpush1.bf16.msra.mxu0 %v185
  %230 = vmatprep.subr.bf16.mxu0 0
  %231 = vmatpush1.bf16.msra.mxu0 %v186
  %232 = vmatprep.subr.bf16.mxu0 0
  %233 = vmatpush1.bf16.msra.mxu0 %v187
  %234 = vmatprep.subr.bf16.mxu0 0
  %235 = vmatpush1.bf16.msra.mxu0 %v188
  %236 = vmatprep.subr.bf16.mxu0 0
  %237 = vmatpush1.bf16.msra.mxu0 %v189
  %238 = vmatprep.subr.bf16.mxu0 0
  %239 = vmatpush1.bf16.msra.mxu0 %v190
  %240 = vmatprep.subr.bf16.mxu0 0
  %241 = vmatpush1.bf16.msra.mxu0 0
  %242 = vmatprep.subr.bf16.mxu0 0
  %243 = vmatpush1.bf16.msra.mxu0 0
  %244 = vmatprep.subr.bf16.mxu0 0
  %245 = vmatpush1.bf16.msra.mxu0 0
  %246 = vmatprep.subr.bf16.mxu0 0
  %247 = vmatpush1.bf16.msra.mxu0 0
  %248 = vmatprep.mubr.bf16.mxu0 %v205
  %249 = vmatmul.mubr.bf16.gmra.mrb[0].mxu0 %v119
  %v250 = vpop.f32.mrb[0].mxu0
  %v251 = vadd.f32 %v58, %v250
  %v252 = vpop.f32.mrb[0].mxu0
  %v253 = vpop.f32.mrb[0].mxu0
  %v254 = vadd.f32 %v63, %v253
  %v255 = vpop.f32.mrb[0].mxu0
  %256 = vmatprep.mubr.bf16.mxu0 %v208
  %257 = vmatmul.mubr.bf16.gmra.mrb[0].mxu0 %v121
  %v258 = vpop.f32.mrb[0].mxu0
  %v259 = vadd.f32 %v68, %v258
  %v260 = vpop.f32.mrb[0].mxu0
  %v261 = vpop.f32.mrb[0].mxu0
  %v262 = vadd.f32 %v73, %v261
  %v263 = vpop.f32.mrb[0].mxu0
  %264 = vmatprep.mubr.bf16.mxu0 %v211
  %265 = vmatmul.mubr.bf16.gmra.mrb[0].mxu0 %v123
  %v266 = vpop.f32.mrb[0].mxu0
  %v267 = vadd.f32 %v78, %v266
  %v268 = vpop.f32.mrb[0].mxu0
  %v269 = vpop.f32.mrb[0].mxu0
  %v270 = vadd.f32 %v83, %v269
  %v271 = vpop.f32.mrb[0].mxu0
  %272 = vmatprep.mubr.bf16.mxu0 %v214
  %273 = vmatmul.mubr.bf16.gmra.mrb[0].mxu0 %v125
  %v274 = vpop.f32.mrb[0].mxu0
  %v275 = vadd.f32 %v88, %v274
  %v276 = vpop.f32.mrb[0].mxu0
  %v277 = vpop.f32.mrb[0].mxu0
  %v278 = vadd.f32 %v93, %v277
  %v279 = vpop.f32.mrb[0].mxu0
  %280 = vdwg.mxu0
  %v281 = vmin.f32 %v251, 20.0
  %v282 = vmin.f32 %v254, 20.0
  %v283 = vmin.f32 %v259, 20.0
  %v284 = vmin.f32 %v262, 20.0
  %v285 = vmin.f32 %v267, 20.0
  %v286 = vmin.f32 %v270, 20.0
  %v287 = vmin.f32 %v275, 20.0
  %v288 = vmin.f32 %v278, 20.0
  %v289 = vmul.f32 %v281, 1.442695
  %v290 = vpow.pop %v289
  %v291 = vmul.f32 %v282, 1.442695
  %v292 = vpow.pop %v291
  %v293 = vmul.f32 %v283, 1.442695
  %v294 = vpow.pop %v293
  %v295 = vmul.f32 %v284, 1.442695
  %v296 = vpow.pop %v295
  %v297 = vmul.f32 %v285, 1.442695
  %v298 = vpow.pop %v297
  %v299 = vmul.f32 %v286, 1.442695
  %v300 = vpow.pop %v299
  %v301 = vmul.f32 %v287, 1.442695
  %v302 = vpow.pop %v301
  %v303 = vmul.f32 %v288, 1.442695
  %v304 = vpow.pop %v303
  %v305 = vadd.f32 %v290, 1.0
  %v306 = vadd.f32 %v292, 1.0
  %v307 = vadd.f32 %v294, 1.0
  %v308 = vadd.f32 %v296, 1.0
  %v309 = vadd.f32 %v298, 1.0
  %v310 = vadd.f32 %v300, 1.0
  %v311 = vadd.f32 %v302, 1.0
  %v312 = vadd.f32 %v304, 1.0
  %v313 = vmul.f32 %v305, %v305
  %v314 = vmul.f32 %v306, %v306
  %v315 = vmul.f32 %v307, %v307
  %v316 = vmul.f32 %v308, %v308
  %v317 = vmul.f32 %v309, %v309
  %v318 = vmul.f32 %v310, %v310
  %v319 = vmul.f32 %v311, %v311
  %v320 = vmul.f32 %v312, %v312
  %v321 = vadd.f32 %v313, 1.0
  %v322 = vadd.f32 %v314, 1.0
  %v323 = vadd.f32 %v315, 1.0
  %v324 = vadd.f32 %v316, 1.0
  %v325 = vadd.f32 %v317, 1.0
  %v326 = vadd.f32 %v318, 1.0
  %v327 = vadd.f32 %v319, 1.0
  %v328 = vadd.f32 %v320, 1.0
  %v329 = vrcp.pop %v321
  %v330 = vrcp.pop %v322
  %v331 = vrcp.pop %v323
  %v332 = vrcp.pop %v324
  %v333 = vrcp.pop %v325
  %v334 = vrcp.pop %v326
  %v335 = vrcp.pop %v327
  %v336 = vrcp.pop %v328
  %v337 = vmul.f32 %v329, 2.0
  %v338 = vmul.f32 %v330, 2.0
  %v339 = vmul.f32 %v331, 2.0
  %v340 = vmul.f32 %v332, 2.0
  %v341 = vmul.f32 %v333, 2.0
  %v342 = vmul.f32 %v334, 2.0
  %v343 = vmul.f32 %v335, 2.0
  %v344 = vmul.f32 %v336, 2.0
  %v345 = vsub.f32 1.0, %v337
  %v346 = vsub.f32 1.0, %v338
  %v347 = vsub.f32 1.0, %v339
  %v348 = vsub.f32 1.0, %v340
  %v349 = vsub.f32 1.0, %v341
  %v350 = vsub.f32 1.0, %v342
  %v351 = vsub.f32 1.0, %v343
  %v352 = vsub.f32 1.0, %v344
  %v353 = vmul.f32 %v251, %v345
  %v354 = vmul.f32 %v254, %v346
  %v355 = vmul.f32 %v259, %v347
  %v356 = vmul.f32 %v262, %v348
  %v357 = vmul.f32 %v267, %v349
  %v358 = vmul.f32 %v270, %v350
  %v359 = vmul.f32 %v275, %v351
  %v360 = vmul.f32 %v278, %v352
  %v361 = vpack.c.bf16 %v354, %v353
  %v362 = vpack.c.bf16 %v356, %v355
  %v363 = vpack.c.bf16 %v358, %v357
  %v364 = vpack.c.bf16 %v360, %v359
  %v369 = vunpack.c.l.b16 %v361
  %v370 = vunpack.c.h.b16 %v361
  %v371 = vunpack.c.l.b16 %v362
  %v372 = vunpack.c.h.b16 %v362
  %v373 = vunpack.c.l.b16 %v363
  %v374 = vunpack.c.h.b16 %v363
  %v375 = vunpack.c.l.b16 %v364
  %v376 = vunpack.c.h.b16 %v364
  %v377 = vpack.c.b16 %v369, %v369
  %v378 = vpack.c.b16 %v370, %v370
  %v379 = vpack.c.b16 %v371, %v371
  %v380 = vpack.c.b16 %v372, %v372
  %v381 = vpack.c.b16 %v373, %v373
  %v382 = vpack.c.b16 %v374, %v374
  %v383 = vpack.c.b16 %v375, %v375
  %v384 = vpack.c.b16 %v376, %v376
  %393 = vst [vmem:[%s3] sm:$0xf] %v377
  %394 = vst [vmem:[%s3 + $0x4] sm:$0xf] %v378
  %395 = vst [vmem:[%s3 + $0x8] sm:$0xf] %v379
  %396 = vst [vmem:[%s3 + $0xc] sm:$0xf] %v380
  %397 = vst [vmem:[%s3 + $0x10] sm:$0xf] %v381
  %398 = vst [vmem:[%s3 + $0x14] sm:$0xf] %v382
  %399 = vst [vmem:[%s3 + $0x18] sm:$0xf] %v383
  %400 = vst [vmem:[%s3 + $0x1c] sm:$0xf] %v384
  // Predicated region
  $region14: #{hourglass_forward.10} parent=0 // pred_check
    _
  $region15: #{hourglass_forward.10} parent=0 // pred_check_branch
    %402 = sbr.rel (0) target = $region17
  $region16: #{hourglass_forward.10} parent=0 // pred_region
    _
  $region17: #{hourglass_forward.10} parent=0 // pred_fallthru
    _
  // Predicated region
  $region18: #{hourglass_forward.10} parent=0 // pred_check
    _
  $region19: #{hourglass_forward.10} parent=0 // pred_check_branch
    %404 = sbr.rel (0) target = $region21
  $region20: #{hourglass_forward.10} parent=0 // pred_region
    _
  $region21: #{hourglass_forward.10} parent=0 // pred_fallthru
    _

// kernel: hourglass_forward.11
$region0: #{hourglass_forward.11}
  #allocation0 [shape = 'u32[]', space=smem, size = 0x4, offset = 0x4, fixed_abs, tag = 'smem constant byte address 0x4 - core index']
  #allocation1 [shape = 'u32[144,128]{1,0:T(1,128)}', space=vmem, size = 0x12000, scoped, tag = 'internal scratch']
  %s0 = inlined_call_operand.vmem [shape: bf16[32,96], index: 0, kind: input, shape index: {}]
  %s1 = inlined_call_operand.vmem [shape: bf16[96,512], index: 1, kind: input, shape index: {}]
  %s2 = inlined_call_operand.vmem [shape: f32[32,1], index: 2, kind: input, shape index: {}]
  %s3 = inlined_call_operand.vmem [shape: f32[32,512], index: 3, kind: output, shape index: {}]
  %s4 = sld [smem:[#allocation0]]
  $region102: #{hourglass_forward.11} parent=0
    _
  %s6 = ssub.s32 1, %s4
  %s7 = scalar_select 0, %s6, %s4
  $region1: #{hourglass_forward.11} parent=0
    #allocation2 [shape = 'u8[98304]{0}', space=vmem, size = 0x18000, scoped, tag = 'input window, operand 1']
    #allocation3 [shape = 'u8[65536]{0}', space=vmem, size = 0x10000, scoped, tag = 'output window, operand 0']
    loop: start=0, step=1, limit=4
    $region2: #{hourglass_forward.11} parent=1 // loop_pre_header
      _
    $region3: #{hourglass_forward.11} parent=1 // loop_header
      %s9 = sphi 0, %s13
      %p10 = scmp.ge.s32.totalorder %s9, 4
      %s17 = sphi 0, %s17
      %s19 = sphi 0, %s17
      %s20 = sphi 0, %s19
      %s34 = sphi 0, %s20
      %s40 = sphi 0, %s42
      %s43 = sphi 0, %s40
      %s44 = sphi 0, %s43
      %s60 = sphi 0, %s44
      %s64 = sphi 0, %s64
      %s66 = sphi 0, %s64
      %s67 = sphi 0, %s66
      %s81 = sphi 0, %s67
      %s87 = sphi 0, %s89
      %s90 = sphi 0, %s87
      %s91 = sphi 0, %s90
      %s107 = sphi 0, %s91
    $region4: #{hourglass_forward.11} parent=1 // loop_header_branch
      %12 = sbr.rel (%p10) target = $region8
    $region5: #{hourglass_forward.11} parent=1 // loop_body
      %s14 = ssub.s32 %s9, 1
      %s15 = ssub.s32 %s9, 2
      %s16 = sadd.s32 %s9, 1
      %s18 = sadd.s32 %s17, 1
      %p21 = scmp.eq.s32.totalorder %s9, 1
      %p22 = scmp.ne.s32.totalorder %s17, %s19
      %p23 = scmp.eq.s32.totalorder %s9, 0
      %p24 = por %p22, %p23
      %p25 = scmp.ne.s32.totalorder %s17, %s19
      %p26 = scmp.eq.s32.totalorder %s14, 1
      %p27 = por %p25, %p26
      %p28 = scmp.ne.s32.totalorder %s19, %s20
      %p29 = scmp.eq.s32.totalorder %s14, 0
      %p30 = por %p28, %p29
      %p31 = scmp.ne.s32.totalorder %s19, %s20
      %p32 = scmp.eq.s32.totalorder %s15, 1
      %p33 = por %p31, %p32
      %p35 = scmp.ne.s32.totalorder %s20, %s34
      %p36 = scmp.eq.s32.totalorder %s15, 0
      %p37 = por %p35, %p36
      %s38 = ssub.s32 %s9, %s16
      %p39 = scmp.eq.s32.totalorder %s38, 0
      %s41 = sadd.s32 %s40, 1
      %s42 = scalar_select %p39, %s40, %s41
      %p45 = pneg %p39
      %p46 = scmp.eq.s32.totalorder %s9, 1
      %p47 = por %p45, %p46
      %p48 = scmp.ne.s32.totalorder %s40, %s43
      %p49 = scmp.eq.s32.totalorder %s9, 0
      %p50 = por %p48, %p49
      %p51 = scmp.ne.s32.totalorder %s40, %s43
      %p52 = scmp.eq.s32.totalorder %s14, 1
      %p53 = por %p51, %p52
      %p54 = scmp.ne.s32.totalorder %s43, %s44
      %p55 = scmp.eq.s32.totalorder %s14, 0
      %p56 = por %p54, %p55
      %p57 = scmp.ne.s32.totalorder %s43, %s44
      %p58 = scmp.eq.s32.totalorder %s15, 1
      %p59 = por %p57, %p58
      %p61 = scmp.ne.s32.totalorder %s44, %s60
      %p62 = scmp.eq.s32.totalorder %s15, 0
      %p63 = por %p61, %p62
      %s65 = sadd.s32 %s64, 1
      %p68 = scmp.eq.s32.totalorder %s9, 1
      %p69 = scmp.ne.s32.totalorder %s64, %s66
      %p70 = scmp.eq.s32.totalorder %s9, 0
      %p71 = por %p69, %p70
      %p72 = scmp.ne.s32.totalorder %s64, %s66
      %p73 = scmp.eq.s32.totalorder %s14, 1
      %p74 = por %p72, %p73
      %p75 = scmp.ne.s32.totalorder %s66, %s67
      %p76 = scmp.eq.s32.totalorder %s14, 0
      %p77 = por %p75, %p76
      %p78 = scmp.ne.s32.totalorder %s66, %s67
      %p79 = scmp.eq.s32.totalorder %s15, 1
      %p80 = por %p78, %p79
      %p82 = scmp.ne.s32.totalorder %s67, %s81
      %p83 = scmp.eq.s32.totalorder %s15, 0
      %p84 = por %p82, %p83
      %s85 = ssub.s32 %s9, %s16
      %p86 = scmp.eq.s32.totalorder %s85, 0
      %s88 = sadd.s32 %s87, 1
      %s89 = scalar_select %p86, %s87, %s88
      %p92 = pneg %p86
      %p93 = scmp.eq.s32.totalorder %s9, 1
      %p94 = por %p92, %p93
      %p95 = scmp.ne.s32.totalorder %s87, %s90
      %p96 = scmp.eq.s32.totalorder %s9, 0
      %p97 = por %p95, %p96
      %p98 = scmp.ne.s32.totalorder %s87, %s90
      %p99 = scmp.eq.s32.totalorder %s14, 1
      %p100 = por %p98, %p99
      %p101 = scmp.ne.s32.totalorder %s90, %s91
      %p102 = scmp.eq.s32.totalorder %s14, 0
      %p103 = por %p101, %p102
      %p104 = scmp.ne.s32.totalorder %s90, %s91
      %p105 = scmp.eq.s32.totalorder %s15, 1
      %p106 = por %p104, %p105
      %p108 = scmp.ne.s32.totalorder %s91, %s107
      %p109 = scmp.eq.s32.totalorder %s15, 0
      %p110 = por %p108, %p109
      %p111 = scmp.le.s32.totalorder 1, %s9
      %p112 = scmp.lt.s32.totalorder %s9, 3
      %p113 = pnand %p111, %p112
      %p114 = pneg %p113
      // Predicated region
      $region9: #{hourglass_forward.11} parent=5 // pred_check
        _
      $region10: #{hourglass_forward.11} parent=5 // pred_check_branch
        %116 = sbr.rel (%p113) target = $region12
      $region11: #{hourglass_forward.11} parent=5 // pred_region
        %s117 = ssub.s32 %s9, 1
        // Predicated region
        $region13: #{hourglass_forward.11} parent=11 // pred_check
          %p118 = pneg %p30
        $region14: #{hourglass_forward.11} parent=11 // pred_check_branch
          %120 = sbr.rel (%p118) target = $region16
        $region15: #{hourglass_forward.11} parent=11 // pred_region
          _
        $region16: #{hourglass_forward.11} parent=11 // pred_fallthru
          _
        // Predicated region
        $region17: #{hourglass_forward.11} parent=11 // pred_check
          %p121 = pneg %p77
        $region18: #{hourglass_forward.11} parent=11 // pred_check_branch
          %123 = sbr.rel (%p121) target = $region20
        $region19: #{hourglass_forward.11} parent=11 // pred_region
          _
        $region20: #{hourglass_forward.11} parent=11 // pred_fallthru
          _
      $region12: #{hourglass_forward.11} parent=5 // pred_fallthru
        _
      %p124 = scmp.lt.s32.totalorder %s9, 2
      // Predicated region
      $region21: #{hourglass_forward.11} parent=5 // pred_check
        %p125 = pneg %p124
      $region22: #{hourglass_forward.11} parent=5 // pred_check_branch
        %127 = sbr.rel (%p125) target = $region24
      $region23: #{hourglass_forward.11} parent=5 // pred_region
        // Predicated region
        $region25: #{hourglass_forward.11} parent=23 // pred_check
          %p128 = pneg %p50
        $region26: #{hourglass_forward.11} parent=23 // pred_check_branch
          %130 = sbr.rel (%p128) target = $region28
        $region27: #{hourglass_forward.11} parent=23 // pred_region
          %s131 = sand.u32 %s40, 1
          %s132 = sand.u32 %s40, 1
          %s133 = smul.addr %s132, 96
          %s134 = scalar_lea.vmem [#allocation2], %s133
          %s135 = smul.u32 2, %s9
          %s136 = smul.addr %s135, 4
          %s137 = scalar_lea.vmem %s1, %s136
          // Predicated region
          $region29: #{hourglass_forward.11} parent=27 // pred_check
            _
          $region30: #{hourglass_forward.11} parent=27 // pred_check_branch
            %139 = sbr.rel (0) target = $region32
          $region31: #{hourglass_forward.11} parent=27 // pred_region
            // Predicated region
            $region33: #{hourglass_forward.11} parent=31 // pred_check
              _
            $region34: #{hourglass_forward.11} parent=31 // pred_check_branch
              %141 = sbr.rel (0) target = $region36
            $region35: #{hourglass_forward.11} parent=31 // pred_region
              // Predicated region
              $region48: #{hourglass_forward.11} parent=35 // pred_check
                _
              $region49: #{hourglass_forward.11} parent=35 // pred_check_branch
                %178 = sbr.rel (0) target = $region51
              $region50: #{hourglass_forward.11} parent=35 // pred_region
                loop: start=0, step=1, limit=1
                $region52: #{hourglass_forward.11} parent=50 // loop_pre_header
                  _
                $region53: #{hourglass_forward.11} parent=50 // loop_header
                  %s180 = sphi 0, %s184
                  %p181 = scmp.ge.s32.totalorder %s180, 1
                  %s185 = sphi %s137, %s137
                  %s186 = sphi %s134, %s134
                $region54: #{hourglass_forward.11} parent=50 // loop_header_branch
                  %183 = sbr.rel (%p181) target = $region58
                $region55: #{hourglass_forward.11} parent=50 // loop_body
                  %v187 = vld [vmem:[%s185] sm:$0xff]
                  %188 = vst [vmem:[%s186] sm:$0xff] %v187
                  %v189 = vld [vmem:[%s185 + $0x10] sm:$0xff]
                  %190 = vst [vmem:[%s186 + $0x8] sm:$0xff] %v189
                  %v191 = vld [vmem:[%s185 + $0x20] sm:$0xff]
                  %192 = vst [vmem:[%s186 + $0x10] sm:$0xff] %v191
                  %v193 = vld [vmem:[%s185 + $0x30] sm:$0xff]
                  %194 = vst [vmem:[%s186 + $0x18] sm:$0xff] %v193
                  %v195 = vld [vmem:[%s185 + $0x40] sm:$0xff]
                  %196 = vst [vmem:[%s186 + $0x20] sm:$0xff] %v195
                  %v197 = vld [vmem:[%s185 + $0x50] sm:$0xff]
                  %198 = vst [vmem:[%s186 + $0x28] sm:$0xff] %v197
                  %v199 = vld [vmem:[%s185 + $0x60] sm:$0xff]
                  %200 = vst [vmem:[%s186 + $0x30] sm:$0xff] %v199
                  %v201 = vld [vmem:[%s185 + $0x70] sm:$0xff]
                  %202 = vst [vmem:[%s186 + $0x38] sm:$0xff] %v201
                  %v203 = vld [vmem:[%s185 + $0x80] sm:$0xff]
                  %204 = vst [vmem:[%s186 + $0x40] sm:$0xff] %v203
                  %v205 = vld [vmem:[%s185 + $0x90] sm:$0xff]
                  %206 = vst [vmem:[%s186 + $0x48] sm:$0xff] %v205
                  %v207 = vld [vmem:[%s185 + $0xa0] sm:$0xff]
                  %208 = vst [vmem:[%s186 + $0x50] sm:$0xff] %v207
                  %v209 = vld [vmem:[%s185 + $0xb0] sm:$0xff]
                  %210 = vst [vmem:[%s186 + $0x58] sm:$0xff] %v209
                $region56: #{hourglass_forward.11} parent=50 // loop_footer
                  %s184 = sadd.s32 1, %s180
                $region57: #{hourglass_forward.11} parent=50 // loop_footer_branch
                  %179 = sbr.rel target = $region53
                $region58: #{hourglass_forward.11} parent=50 // loop_exit
                  _
              $region51: #{hourglass_forward.11} parent=35 // pred_fallthru
                _
              // Predicated region
              $region59: #{hourglass_forward.11} parent=35 // pred_check
                _
              $region60: #{hourglass_forward.11} parent=35 // pred_check_branch
                %212 = sbr.rel target = $region62
              $region61: #{hourglass_forward.11} parent=35 // pred_region
                _
              $region62: #{hourglass_forward.11} parent=35 // pred_fallthru
                _
            $region36: #{hourglass_forward.11} parent=31 // pred_fallthru
              _
            // Predicated region
            $region37: #{hourglass_forward.11} parent=31 // pred_check
              _
            $region38: #{hourglass_forward.11} parent=31 // pred_check_branch
              %143 = sbr.rel target = $region40
            $region39: #{hourglass_forward.11} parent=31 // pred_region
              loop: start=0, step=1, limit=1
              $region41: #{hourglass_forward.11} parent=39 // loop_pre_header
                _
              $region42: #{hourglass_forward.11} parent=39 // loop_header
                %s146 = sphi 0, %s150
                %p147 = scmp.ge.s32.totalorder %s146, 1
                %s151 = sphi %s137, %s137
                %s152 = sphi %s134, %s134
              $region43: #{hourglass_forward.11} parent=39 // loop_header_branch
                %149 = sbr.rel (%p147) target = $region47
              $region44: #{hourglass_forward.11} parent=39 // loop_body
                %v153 = vld [vmem:[%s151] sm:$0xff]
                %154 = vst [vmem:[%s152] sm:$0xff] %v153
                %v155 = vld [vmem:[%s151 + $0x10] sm:$0xff]
                %156 = vst [vmem:[%s152 + $0x8] sm:$0xff] %v155
                %v157 = vld [vmem:[%s151 + $0x20] sm:$0xff]
                %158 = vst [vmem:[%s152 + $0x10] sm:$0xff] %v157
                %v159 = vld [vmem:[%s151 + $0x30] sm:$0xff]
                %160 = vst [vmem:[%s152 + $0x18] sm:$0xff] %v159
                %v161 = vld [vmem:[%s151 + $0x40] sm:$0xff]
                %162 = vst [vmem:[%s152 + $0x20] sm:$0xff] %v161
                %v163 = vld [vmem:[%s151 + $0x50] sm:$0xff]
                %164 = vst [vmem:[%s152 + $0x28] sm:$0xff] %v163
                %v165 = vld [vmem:[%s151 + $0x60] sm:$0xff]
                %166 = vst [vmem:[%s152 + $0x30] sm:$0xff] %v165
                %v167 = vld [vmem:[%s151 + $0x70] sm:$0xff]
                %168 = vst [vmem:[%s152 + $0x38] sm:$0xff] %v167
                %v169 = vld [vmem:[%s151 + $0x80] sm:$0xff]
                %170 = vst [vmem:[%s152 + $0x40] sm:$0xff] %v169
                %v171 = vld [vmem:[%s151 + $0x90] sm:$0xff]
                %172 = vst [vmem:[%s152 + $0x48] sm:$0xff] %v171
                %v173 = vld [vmem:[%s151 + $0xa0] sm:$0xff]
                %174 = vst [vmem:[%s152 + $0x50] sm:$0xff] %v173
                %v175 = vld [vmem:[%s151 + $0xb0] sm:$0xff]
                %176 = vst [vmem:[%s152 + $0x58] sm:$0xff] %v175
              $region45: #{hourglass_forward.11} parent=39 // loop_footer
                %s150 = sadd.s32 1, %s146
              $region46: #{hourglass_forward.11} parent=39 // loop_footer_branch
                %145 = sbr.rel target = $region42
              $region47: #{hourglass_forward.11} parent=39 // loop_exit
                _
            $region40: #{hourglass_forward.11} parent=31 // pred_fallthru
              _
          $region32: #{hourglass_forward.11} parent=27 // pred_fallthru
            _
          %213 = vnop
        $region28: #{hourglass_forward.11} parent=23 // pred_fallthru
          _
      $region24: #{hourglass_forward.11} parent=5 // pred_fallthru
        _
      %p214 = scmp.le.s32.totalorder 1, %s9
      %p215 = scmp.lt.s32.totalorder %s9, 3
      %p216 = pnand %p214, %p215
      %p217 = pneg %p216
      // Predicated region
      $region63: #{hourglass_forward.11} parent=5 // pred_check
        _
      $region64: #{hourglass_forward.11} parent=5 // pred_check_branch
        %219 = sbr.rel (%p216) target = $region66
      $region65: #{hourglass_forward.11} parent=5 // pred_region
        %s220 = ssub.s32 %s9, 1
        %s221 = sand.u32 %s43, 1
        %s222 = sand.u32 %s43, 1
        %s223 = smul.addr %s222, 96
        %s224 = scalar_lea.vmem [#allocation2], %s223
        // Predicated region
        $region67: #{hourglass_forward.11} parent=65 // pred_check
          %p225 = pneg %p56
        $region68: #{hourglass_forward.11} parent=65 // pred_check_branch
          %227 = sbr.rel (%p225) target = $region70
        $region69: #{hourglass_forward.11} parent=65 // pred_region
          _
        $region70: #{hourglass_forward.11} parent=65 // pred_fallthru
          _
        %p228 = pneg %p30
        %p229 = pneg %p27
        %s230 = sand.u32 %s43, 1
        %s231 = sand.u32 %s43, 1
        %s232 = smul.addr %s231, 96
        %s233 = scalar_lea.vmem [#allocation2], %s232
        %p234 = pneg %p56
        %p235 = pneg %p53
        %p236 = pneg %p77
        %p237 = pneg %p74
        %p238 = pneg %p103
        %p239 = pneg %p100
        %s240 = sand.u32 %s90, 1
        %s241 = sand.u32 %s90, 1
        %s242 = smul.addr %s241, 64
        %s243 = scalar_lea.vmem [#allocation3], %s242
        %s244 = smul.u32 2, %s14
        %s245 = smul.u32 2, %s14
        %v247 = vld [vmem:[%s0] sm:$0xf]
        %v248 = vld [vmem:[%s0 + $0x4] sm:$0xf]
        %v249 = vld [vmem:[%s0 + $0x8] sm:$0xf]
        %v250 = vld [vmem:[%s0 + $0xc] sm:$0xf]
        %v251 = vld [vmem:[%s224] sm:$0xff]
        %v252 = vld [vmem:[%s224 + $0x8] sm:$0xff]
        %v253 = vld [vmem:[%s224 + $0x10] sm:$0xff]
        %v254 = vld [vmem:[%s224 + $0x18] sm:$0xff]
        %v255 = vld [vmem:[%s224 + $0x20] sm:$0xff]
        %v256 = vld [vmem:[%s224 + $0x28] sm:$0xff]
        %v257 = vld [vmem:[%s224 + $0x30] sm:$0xff]
        %v258 = vld [vmem:[%s224 + $0x38] sm:$0xff]
        %v259 = vld [vmem:[%s224 + $0x40] sm:$0xff]
        %v260 = vld [vmem:[%s224 + $0x48] sm:$0xff]
        %v261 = vld [vmem:[%s224 + $0x50] sm:$0xff]
        %v262 = vld [vmem:[%s224 + $0x58] sm:$0xff]
        %v263 = vld [vmem:[%s2] sm:$0xff]
        %v264 = vld [vmem:[%s2 + $0x8] sm:$0xff]
        %v265 = vld [vmem:[%s2 + $0x10] sm:$0xff]
        %v266 = vld [vmem:[%s2 + $0x18] sm:$0xff]
        %268 = vset.pattern.permute.xlu0 0
        %269 = vperm.xlu0 %268, %v263
        %v270 = vpop.permute.xlu0 %269
        %273 = vset.pattern.permute.xlu0 0
        %274 = vperm.xlu0 %273, %v264
        %v275 = vpop.permute.xlu0 %274
        %278 = vset.pattern.permute.xlu0 0
        %279 = vperm.xlu0 %278, %v265
        %v280 = vpop.permute.xlu0 %279
        %283 = vset.pattern.permute.xlu0 0
        %284 = vperm.xlu0 %283, %v266
        %v285 = vpop.permute.xlu0 %284
        %v291 = vunpack.c.l.b16 %v247
        %v292 = vunpack.c.l.b16 %v248
        %v293 = vunpack.c.l.b16 %v249
        %v294 = vunpack.c.l.b16 %v250
        %v295 = vpack.c.b16 %v292, %v291
        %v296 = vpack.c.b16 %v294, %v293
        %v309 = vunpack.c.l.b16 %v251
        %v310 = vunpack.c.h.b16 %v251
        %v311 = vunpack.c.l.b16 %v252
        %v312 = vunpack.c.h.b16 %v252
        %v313 = vunpack.c.l.b16 %v253
        %v314 = vunpack.c.h.b16 %v253
        %v315 = vunpack.c.l.b16 %v254
        %v316 = vunpack.c.h.b16 %v254
        %v317 = vunpack.c.l.b16 %v255
        %v318 = vunpack.c.h.b16 %v255
        %v319 = vunpack.c.l.b16 %v256
        %v320 = vunpack.c.h.b16 %v256
        %v321 = vunpack.c.l.b16 %v257
        %v322 = vunpack.c.h.b16 %v257
        %v323 = vunpack.c.l.b16 %v258
        %v324 = vunpack.c.h.b16 %v258
        %v325 = vunpack.c.l.b16 %v259
        %v326 = vunpack.c.h.b16 %v259
        %v327 = vunpack.c.l.b16 %v260
        %v328 = vunpack.c.h.b16 %v260
        %v329 = vunpack.c.l.b16 %v261
        %v330 = vunpack.c.h.b16 %v261
        %v331 = vunpack.c.l.b16 %v262
        %v332 = vunpack.c.h.b16 %v262
        %v333 = vpack.c.b16 %v311, %v309
        %v334 = vpack.c.b16 %v312, %v310
        %v335 = vpack.c.b16 %v315, %v313
        %v336 = vpack.c.b16 %v316, %v314
        %v337 = vpack.c.b16 %v319, %v317
        %v338 = vpack.c.b16 %v320, %v318
        %v339 = vpack.c.b16 %v323, %v321
        %v340 = vpack.c.b16 %v324, %v322
        %v341 = vpack.c.b16 %v327, %v325
        %v342 = vpack.c.b16 %v328, %v326
        %v343 = vpack.c.b16 %v331, %v329
        %v344 = vpack.c.b16 %v332, %v330
        %vm357 = vcmask 785408
        %v359 = vsel %vm357, %v295, 0
        %v362 = vsel %vm357, %v296, 0
        %364 = vmatprep.subr.bf16.mxu0 %v334
        %365 = vmatpush1.bf16.msra.mxu0 %v333
        %366 = vmatprep.subr.bf16.mxu0 %v336
        %367 = vmatpush1.bf16.msra.mxu0 %v335
        %368 = vmatprep.subr.bf16.mxu0 %v338
        %369 = vmatpush1.bf16.msra.mxu0 %v337
        %370 = vmatprep.subr.bf16.mxu0 %v340
        %371 = vmatpush1.bf16.msra.mxu0 %v339
        %372 = vmatprep.subr.bf16.mxu0 %v342
        %373 = vmatpush1.bf16.msra.mxu0 %v341
        %374 = vmatprep.subr.bf16.mxu0 %v344
        %375 = vmatpush1.bf16.msra.mxu0 %v343
        %376 = vmatprep.subr.bf16.mxu0 0
        %377 = vmatpush1.bf16.msra.mxu0 0
        %378 = vmatprep.subr.bf16.mxu0 0
        %379 = vmatpush1.bf16.msra.mxu0 0
        %380 = vmatprep.subr.bf16.mxu0 0
        %381 = vmatpush1.bf16.msra.mxu0 0
        %382 = vmatprep.subr.bf16.mxu0 0
        %383 = vmatpush1.bf16.msra.mxu0 0
        %384 = vmatprep.subr.bf16.mxu0 0
        %385 = vmatpush1.bf16.msra.mxu0 0
        %386 = vmatprep.subr.bf16.mxu0 0
        %387 = vmatpush1.bf16.msra.mxu0 0
        %388 = vmatprep.subr.bf16.mxu0 0
        %389 = vmatpush1.bf16.msra.mxu0 0
        %390 = vmatprep.subr.bf16.mxu0 0
        %391 = vmatpush1.bf16.msra.mxu0 0
        %392 = vmatprep.subr.bf16.mxu0 0
        %393 = vmatpush1.bf16.msra.mxu0 0
        %394 = vmatprep.subr.bf16.mxu0 0
        %395 = vmatpush1.bf16.msra.mxu0 0
        %396 = vmatprep.mubr.bf16.mxu0 0
        %397 = vmatmul.mubr.bf16.gmra.mrb[0].mxu0 %v359
        %v398 = vpop.f32.mrb[0].mxu0
        %v399 = vadd.f32 %v270, %v398
        %v400 = vpop.f32.mrb[0].mxu0
        %v401 = vadd.f32 %v270, %v400
        %v402 = vpop.f32.mrb[0].mxu0
        %v403 = vadd.f32 %v275, %v402
        %v404 = vpop.f32.mrb[0].mxu0
        %v405 = vadd.f32 %v275, %v404
        %406 = vmatprep.mubr.bf16.mxu0 0
        %407 = vmatmul.mubr.bf16.gmra.mrb[0].mxu0 %v362
        %v408 = vpop.f32.mrb[0].mxu0
        %v409 = vadd.f32 %v280, %v408
        %v410 = vpop.f32.mrb[0].mxu0
        %v411 = vadd.f32 %v280, %v410
        %v412 = vpop.f32.mrb[0].mxu0
        %v413 = vadd.f32 %v285, %v412
        %v414 = vpop.f32.mrb[0].mxu0
        %v415 = vadd.f32 %v285, %v414
        %416 = vdwg.mxu0
        %v417 = vmin.f32 %v399, 20.0
        %v418 = vmin.f32 %v401, 20.0
        %v419 = vmin.f32 %v403, 20.0
        %v420 = vmin.f32 %v405, 20.0
        %v421 = vmin.f32 %v409, 20.0
        %v422 = vmin.f32 %v411, 20.0
        %v423 = vmin.f32 %v413, 20.0
        %v424 = vmin.f32 %v415, 20.0
        %v425 = vmul.f32 %v417, 1.442695
        %v426 = vpow.pop %v425
        %v427 = vmul.f32 %v418, 1.442695
        %v428 = vpow.pop %v427
        %v429 = vmul.f32 %v419, 1.442695
        %v430 = vpow.pop %v429
        %v431 = vmul.f32 %v420, 1.442695
        %v432 = vpow.pop %v431
        %v433 = vmul.f32 %v421, 1.442695
        %v434 = vpow.pop %v433
        %v435 = vmul.f32 %v422, 1.442695
        %v436 = vpow.pop %v435
        %v437 = vmul.f32 %v423, 1.442695
        %v438 = vpow.pop %v437
        %v439 = vmul.f32 %v424, 1.442695
        %v440 = vpow.pop %v439
        %v441 = vadd.f32 %v426, 1.0
        %v442 = vadd.f32 %v428, 1.0
        %v443 = vadd.f32 %v430, 1.0
        %v444 = vadd.f32 %v432, 1.0
        %v445 = vadd.f32 %v434, 1.0
        %v446 = vadd.f32 %v436, 1.0
        %v447 = vadd.f32 %v438, 1.0
        %v448 = vadd.f32 %v440, 1.0
        %v449 = vmul.f32 %v441, %v441
        %v450 = vmul.f32 %v442, %v442
        %v451 = vmul.f32 %v443, %v443
        %v452 = vmul.f32 %v444, %v444
        %v453 = vmul.f32 %v445, %v445
        %v454 = vmul.f32 %v446, %v446
        %v455 = vmul.f32 %v447, %v447
        %v456 = vmul.f32 %v448, %v448
        %v457 = vadd.f32 %v449, 1.0
        %v458 = vadd.f32 %v450, 1.0
        %v459 = vadd.f32 %v451, 1.0
        %v460 = vadd.f32 %v452, 1.0
        %v461 = vadd.f32 %v453, 1.0
        %v462 = vadd.f32 %v454, 1.0
        %v463 = vadd.f32 %v455, 1.0
        %v464 = vadd.f32 %v456, 1.0
        %v465 = vrcp.pop %v457
        %v466 = vrcp.pop %v458
        %v467 = vrcp.pop %v459
        %v468 = vrcp.pop %v460
        %v469 = vrcp.pop %v461
        %v470 = vrcp.pop %v462
        %v471 = vrcp.pop %v463
        %v472 = vrcp.pop %v464
        %v473 = vmul.f32 %v465, 2.0
        %v474 = vmul.f32 %v466, 2.0
        %v475 = vmul.f32 %v467, 2.0
        %v476 = vmul.f32 %v468, 2.0
        %v477 = vmul.f32 %v469, 2.0
        %v478 = vmul.f32 %v470, 2.0
        %v479 = vmul.f32 %v471, 2.0
        %v480 = vmul.f32 %v472, 2.0
        %v481 = vsub.f32 1.0, %v473
        %v482 = vsub.f32 1.0, %v474
        %v483 = vsub.f32 1.0, %v475
        %v484 = vsub.f32 1.0, %v476
        %v485 = vsub.f32 1.0, %v477
        %v486 = vsub.f32 1.0, %v478
        %v487 = vsub.f32 1.0, %v479
        %v488 = vsub.f32 1.0, %v480
        %v489 = vmul.f32 %v399, %v481
        %v490 = vmul.f32 %v401, %v482
        %v491 = vmul.f32 %v403, %v483
        %v492 = vmul.f32 %v405, %v484
        %v493 = vmul.f32 %v409, %v485
        %v494 = vmul.f32 %v411, %v486
        %v495 = vmul.f32 %v413, %v487
        %v496 = vmul.f32 %v415, %v488
        %497 = vst [vmem:[%s243] sm:$0xff] %v489
        %498 = vst [vmem:[%s243 + $0x8] sm:$0xff] %v490
        %499 = vst [vmem:[%s243 + $0x10] sm:$0xff] %v491
        %500 = vst [vmem:[%s243 + $0x18] sm:$0xff] %v492
        %501 = vst [vmem:[%s243 + $0x20] sm:$0xff] %v493
        %502 = vst [vmem:[%s243 + $0x28] sm:$0xff] %v494
        %503 = vst [vmem:[%s243 + $0x30] sm:$0xff] %v495
        %504 = vst [vmem:[%s243 + $0x38] sm:$0xff] %v496
        %s505 = sand.u32 %s90, 1
        %s506 = sand.u32 %s90, 1
        %s507 = smul.addr %s506, 64
        %s508 = scalar_lea.vmem [#allocation3], %s507
        // Predicated region
        $region71: #{hourglass_forward.11} parent=65 // pred_check
          %p509 = pneg %p100
        $region72: #{hourglass_forward.11} parent=65 // pred_check_branch
          %511 = sbr.rel (%p509) target = $region74
        $region73: #{hourglass_forward.11} parent=65 // pred_region
          %s512 = smul.u32 2, %s14
          %s513 = smul.addr %s512, 8
          %s514 = scalar_lea.vmem %s3, %s513
          // Predicated region
          $region75: #{hourglass_forward.11} parent=73 // pred_check
            _
          $region76: #{hourglass_forward.11} parent=73 // pred_check_branch
            %516 = sbr.rel (0) target = $region78
          $region77: #{hourglass_forward.11} parent=73 // pred_region
            // Predicated region
            $region79: #{hourglass_forward.11} parent=77 // pred_check
              _
            $region80: #{hourglass_forward.11} parent=77 // pred_check_branch
              %518 = sbr.rel (0) target = $region82
            $region81: #{hourglass_forward.11} parent=77 // pred_region
              loop: start=0, step=1, limit=1
              $region83: #{hourglass_forward.11} parent=81 // loop_pre_header
                _
              $region84: #{hourglass_forward.11} parent=81 // loop_header
                %s520 = sphi 0, %s524
                %p521 = scmp.ge.s32.totalorder %s520, 1
                %s525 = sphi %s508, %s508
                %s526 = sphi %s514, %s514
              $region85: #{hourglass_forward.11} parent=81 // loop_header_branch
                %523 = sbr.rel (%p521) target = $region89
              $region86: #{hourglass_forward.11} parent=81 // loop_body
                %v527 = vld [vmem:[%s525] sm:$0xff]
                %528 = vst [vmem:[%s526] sm:$0xff] %v527
                %v529 = vld [vmem:[%s525 + $0x8] sm:$0xff]
                %530 = vst [vmem:[%s526 + $0x8] sm:$0xff] %v529
                %v531 = vld [vmem:[%s525 + $0x10] sm:$0xff]
                %532 = vst [vmem:[%s526 + $0x20] sm:$0xff] %v531
                %v533 = vld [vmem:[%s525 + $0x18] sm:$0xff]
                %534 = vst [vmem:[%s526 + $0x28] sm:$0xff] %v533
                %v535 = vld [vmem:[%s525 + $0x20] sm:$0xff]
                %536 = vst [vmem:[%s526 + $0x40] sm:$0xff] %v535
                %v537 = vld [vmem:[%s525 + $0x28] sm:$0xff]
                %538 = vst [vmem:[%s526 + $0x48] sm:$0xff] %v537
                %v539 = vld [vmem:[%s525 + $0x30] sm:$0xff]
                %540 = vst [vmem:[%s526 + $0x60] sm:$0xff] %v539
                %v541 = vld [vmem:[%s525 + $0x38] sm:$0xff]
                %542 = vst [vmem:[%s526 + $0x68] sm:$0xff] %v541
              $region87: #{hourglass_forward.11} parent=81 // loop_footer
                %s524 = sadd.s32 1, %s520
              $region88: #{hourglass_forward.11} parent=81 // loop_footer_branch
                %519 = sbr.rel target = $region84
              $region89: #{hourglass_forward.11} parent=81 // loop_exit
                _
            $region82: #{hourglass_forward.11} parent=77 // pred_fallthru
              _
            // Predicated region
            $region90: #{hourglass_forward.11} parent=77 // pred_check
              _
            $region91: #{hourglass_forward.11} parent=77 // pred_check_branch
              %544 = sbr.rel target = $region93
            $region92: #{hourglass_forward.11} parent=77 // pred_region
              _
            $region93: #{hourglass_forward.11} parent=77 // pred_fallthru
              _
          $region78: #{hourglass_forward.11} parent=73 // pred_fallthru
            _
          %545 = vnop
        $region74: #{hourglass_forward.11} parent=65 // pred_fallthru
          _
      $region66: #{hourglass_forward.11} parent=5 // pred_fallthru
        _
      %p546 = scmp.le.s32.totalorder 2, %s9
      // Predicated region
      $region94: #{hourglass_forward.11} parent=5 // pred_check
        %p547 = pneg %p546
      $region95: #{hourglass_forward.11} parent=5 // pred_check_branch
        %549 = sbr.rel (%p547) target = $region97
      $region96: #{hourglass_forward.11} parent=5 // pred_region
        %s550 = ssub.s32 %s9, 2
        // Predicated region
        $region98: #{hourglass_forward.11} parent=96 // pred_check
          %p551 = pneg %p106
        $region99: #{hourglass_forward.11} parent=96 // pred_check_branch
          %553 = sbr.rel (%p551) target = $region101
        $region100: #{hourglass_forward.11} parent=96 // pred_region
          %s554 = sand.u32 %s91, 1
          %s555 = sand.u32 %s91, 1
          %s556 = smul.addr %s555, 64
          %s557 = scalar_lea.vmem [#allocation3], %s556
        $region101: #{hourglass_forward.11} parent=96 // pred_fallthru
          _
      $region97: #{hourglass_forward.11} parent=5 // pred_fallthru
        _
    $region6: #{hourglass_forward.11} parent=1 // loop_footer
      %s13 = sadd.s32 1, %s9
    $region7: #{hourglass_forward.11} parent=1 // loop_footer_branch
      %8 = sbr.rel target = $region3
    $region8: #{hourglass_forward.11} parent=1 // loop_exit
      _

</llo_original>
